<compile_context>
chip_gen: v7x
topology: tpu7x:2x2x1
jax: 0.10.0
libtpu: 0.0.40
codegen_flags: <defaults>
</compile_context>

<pallas_src>
import functools

import jax
import jax.numpy as jnp
from jax.experimental import pallas as pl
from jax.experimental.pallas import tpu as pltpu

KERNEL_LIST = (3, 9)
BN_EPS = 1e-5


def _round_up(x, m):
  return (x + m - 1) // m * m


def _epfm_kernel(x_ref, wfused_ref, wg_ref, bg_ref, w2_ref, b2_ref, sel_ref,
                 o_ref, ws_ref, *, H, W, Wp, pmax, GC, seg):
  """One grid step = G images (GC = G*C channel rows), planes on the lane axis."""
  S = ws_ref.shape[1]

  # ---- in-kernel zero padding: copy image rows into a zeroed scratch --------
  # ws_ref rows [seg, seg+GC) hold the padded planes; rows [0, GC) and
  # [2*seg, 2*seg+GC) are filled with edge / cpgm below and row 3*seg with
  # ones, so ws_ref[...] is exactly the stacked operand of the fused matmul.
  ws_ref[...] = jnp.zeros_like(ws_ref)
  xin = x_ref[0].astype(jnp.float32)                        # (GC, Sin)
  for i in range(H):                                        # unrolled; H small
    dst = (i + pmax) * Wp + pmax
    ws_ref[seg:seg + GC, dst:dst + W] = xin[:, i * W:(i + 1) * W]
  xp = ws_ref[seg:seg + GC, :]                              # (GC, S) zero halo

  def shift(v, d):                                          # y[:, i] = v[:, i+d]
    # Circular roll; the zero halo + zero tail guarantee the wrap never reaches
    # a position that feeds a valid output (asserted in the wrapper).
    return pltpu.roll(v, shift=(-d) % S, axis=1) if d else v

  # ---- EDM edge map: hierarchical separable box sums (10 rolls total) -------
  # edge = sum_{k in (3, 9)} (x - AvgPool_k(x))
  h3 = xp + shift(xp, 1) + shift(xp, -1)                    # horizontal 3-sum
  v3 = h3 + shift(h3, Wp) + shift(h3, -Wp)                  # 3x3 box sum
  h9 = h3 + shift(h3, 3) + shift(h3, -3)                    # horizontal 9-sum
  t9 = h9 + shift(h9, Wp) + shift(h9, -Wp)
  v9 = t9 + shift(t9, 3 * Wp) + shift(t9, -3 * Wp)          # 9x9 box sum
  edge = (xp - v3 * (1.0 / 9.0)) + (xp - v9 * (1.0 / 81.0))

  # ---- CPGM channel gate from lane-reduced GAP (no plane-wide matmul) -------
  gap = jnp.sum(xp, axis=1, keepdims=True) * (1.0 / (H * W))        # (GC, 1)
  gapb = jnp.broadcast_to(gap, (GC, 128))                   # lane-dense matvec
  gp = jnp.dot(wg_ref[...], gapb, preferred_element_type=jnp.float32)
  gate = jax.nn.sigmoid(gp[:, :1] + bg_ref[...])                    # (GC, 1)
  cpgm = xp * gate                                                  # (GC, S)

  # ---- mlp: ONE fused matmul over [edge ; x ; cpgm ; ones(bias)] ------------
  ws_ref[0:GC, :] = edge
  ws_ref[2 * seg:2 * seg + GC, :] = cpgm
  ws_ref[3 * seg:3 * seg + 1, :] = jnp.ones((1, S), jnp.float32)
  h = jnp.dot(wfused_ref[...], ws_ref[...],
              preferred_element_type=jnp.float32)           # (GCO, S) + bias
  h = jax.nn.gelu(h, approximate=True)
  h = jnp.dot(w2_ref[...], h, preferred_element_type=jnp.float32)

  # ---- MaxPool2d(2, stride=2) + in-kernel stride-2 anchor compaction --------
  m = jnp.maximum(h, shift(h, 1))                           # pair along w
  m = jnp.maximum(m, shift(m, Wp))                          # pair along h
  out = jnp.dot(m, sel_ref[...], preferred_element_type=jnp.float32)
  o_ref[0] = (out + b2_ref[...]).astype(o_ref.dtype)        # (GCO, S_out) dense


def _num_tensorcores_per_chip():
  try:
    kind = jax.devices()[0].device_kind.lower()
  except Exception:
    return 1
  # v5e / v6e ("lite" parts) have one TensorCore per chip; v2-v4, v5p, v7x two.
  if "lite" in kind or "v5e" in kind or "v6e" in kind:
    return 1
  return 2


def _fold_params(params, C, CO, G, seg):
  """Fold BN scales/shifts, the EDM conv chain and biases into packed weights."""
  p = params
  s1, sh1 = p["bn1_s"][0], p["bn1_b"][0]                    # (2C,)
  s2, sh2 = p["bn2_s"][0], p["bn2_b"][0]                    # (CO,)
  b1, b2 = p["b1"][0], p["b2"][0]
  b_edm, bg = p["b_edm"][0], p["bg"][0]

  W1 = p["w1"].T                                            # (CO, 2C) out x in
  W1a_f = W1[:, :C] * s1[:C][None, :]                       # BN1 fold (edm half)
  W1b_f = W1[:, C:] * s1[C:][None, :]                       # BN1 fold (cpgm half)
  b1_f = b1 + W1[:, :C] @ sh1[:C] + W1[:, C:] @ sh1[C:]

  A = W1a_f @ p["w_edm"].T                                  # edge path  (CO, C)
  b_h = W1a_f @ b_edm + b1_f                                # (CO,)

  W2f = p["w2"].T * s2[:, None]                             # BN2 folded (CO, CO)
  b2_f = s2 * b2 + sh2
  wgT = p["wg"].T                                           # (C, C) out x in

  eye = jnp.eye(G, dtype=jnp.float32)
  bd = lambda m: jnp.kron(eye, m)                           # per-image block diag
  tcol = lambda v: jnp.tile(v.reshape(-1, 1), (G, 1))

  GC, GCO = G * C, G * CO
  # Fused 1x1-conv weights: columns [0,GC) act on edge, [seg, seg+GC) on the
  # residual x, [2*seg, 2*seg+GC) on cpgm, column 3*seg carries the bias (its
  # scratch row is all ones); remaining columns hit zeroed scratch rows.
  wfused = jnp.zeros((GCO, 3 * seg + 1), jnp.float32)
  wfused = wfused.at[:, 0:GC].set(bd(A))
  wfused = wfused.at[:, seg:seg + GC].set(bd(W1a_f))
  wfused = wfused.at[:, 2 * seg:2 * seg + GC].set(bd(W1b_f))
  wfused = wfused.at[:, 3 * seg].set(jnp.tile(b_h, G))

  return wfused, bd(wgT), tcol(bg), bd(W2f), tcol(b2_f)


def epfm_forward(x_nchw, params, *, images_per_step=None):
  """EPFM forward (NCHW in / NCHW out); core compute in one Pallas kernel."""
  N, C, H, W = x_nchw.shape
  CO = params["w2"].shape[0]
  assert H % 2 == 0 and W % 2 == 0
  assert tuple(KERNEL_LIST) == (3, 9), "EDM roll tree is specialized to [3, 9]"
  pmax = max(KERNEL_LIST) // 2

  # Padded-plane geometry: pmax halo on every side plus a flat zero lane tail
  # up to a multiple of 128 (instead of whole extra zero rows).
  Wp, Hp = W + 2 * pmax, H + 2 * pmax
  S = _round_up(Hp * Wp, 128)
  Sin = _round_up(H * W, 128)
  H2, W2 = H // 2, W // 2
  S_out = _round_up(H2 * W2, 128)
  # Circular-roll / max-pool safety for the in-kernel shifts (see kernel).
  assert Hp == H + 2 * pmax and Wp == W + 2 * pmax and S >= Hp * Wp

  # Images per grid step: split the batch across TensorCores on 2-TC parts and
  # cap the block-diagonal fold so G*max(C, CO) stays within one MXU tile.
  cap = max(1, 128 // max(C, CO))
  if images_per_step is not None:
    G = max(1, min(images_per_step, N, cap))
  else:
    G = max(1, min(pl.cdiv(N, _num_tensorcores_per_chip()), cap))
  Npad = _round_up(N, G)                  # pad batch so every core gets work
  groups = Npad // G
  GC, GCO = G * C, G * CO
  seg = _round_up(GC, 8)                  # sublane-aligned segment stride

  x = x_nchw
  if Npad != N:
    x = jnp.pad(x, ((0, Npad - N), (0, 0), (0, 0), (0, 0)))
  xf = x.reshape(Npad, C, H * W)
  if Sin != H * W:
    xf = jnp.pad(xf, ((0, 0), (0, 0), (0, Sin - H * W)))
  xg = xf.reshape(groups, GC, Sin)        # unpadded planes; halo added in-kernel

  wfused, wg_bd, bg_col, w2_bd, b2_col = _fold_params(params, C, CO, G, seg)

  # 0/1 selection matrix: picks the stride-2 max-pool anchors (and drops the
  # halo) on the MXU, so the kernel writes a small lane-dense output block.
  t = jnp.arange(S_out)
  src = (pmax + 2 * (t // W2)) * Wp + pmax + 2 * (t % W2)
  src = jnp.where(t < H2 * W2, src, -1)
  sel = (jnp.arange(S)[:, None] == src[None, :]).astype(jnp.float32)

  def _full(a):
    nd = a.ndim
    return pl.BlockSpec(a.shape, lambda g, _nd=nd: (0,) * _nd)

  kernel = functools.partial(_epfm_kernel, H=H, W=W, Wp=Wp, pmax=pmax,
                             GC=GC, seg=seg)
  out = pl.pallas_call(
      kernel,
      out_shape=jax.ShapeDtypeStruct((groups, GCO, S_out), jnp.float32),
      grid_spec=pltpu.PrefetchScalarGridSpec(
          num_scalar_prefetch=0,
          grid=(groups,),
          in_specs=[pl.BlockSpec((1, GC, Sin), lambda g: (g, 0, 0)),
                    _full(wfused), _full(wg_bd), _full(bg_col),
                    _full(w2_bd), _full(b2_col), _full(sel)],
          out_specs=pl.BlockSpec((1, GCO, S_out), lambda g: (g, 0, 0)),
          scratch_shapes=[pltpu.VMEM((3 * seg + 1, S), jnp.float32)],
      ),
      compiler_params=pltpu.CompilerParams(dimension_semantics=("parallel",)),
  )(xg, wfused, wg_bd, bg_col, w2_bd, b2_col, sel)

  out = out.reshape(Npad, CO, S_out)[:N, :, :H2 * W2]
  return out.reshape(N, CO, H2, W2)


def epfm_reference(x_nchw, params):
  """Plain-JAX reference of the same (unfolded) math, for validation."""
  p = params
  x = jnp.transpose(x_nchw, (0, 2, 3, 1)).astype(jnp.float32)      # NHWC
  N, H, W, C = x.shape
  edge = jnp.zeros_like(x)
  for k in KERNEL_LIST:
    pad = k // 2
    xp = jnp.pad(x, ((0, 0), (pad, pad), (pad, pad), (0, 0)))
    acc = jnp.zeros_like(x)
    for di in range(k):
      for dj in range(k):
        acc = acc + xp[:, di:di + H, dj:dj + W, :]
    edge = edge + (x - acc / (k * k))
  edm = jnp.einsum("nhwc,cd->nhwd", edge, p["w_edm"]) + p["b_edm"][0] + x
  gap = jnp.mean(x, axis=(1, 2))                                   # (N, C)
  gate = jax.nn.sigmoid(gap @ p["wg"] + p["bg"][0])
  cpgm = x * gate[:, None, None, :]
  cat = jnp.concatenate([edm, cpgm], axis=-1)
  h = cat * p["bn1_s"][0] + p["bn1_b"][0]
  h = jnp.einsum("nhwc,cd->nhwd", h, p["w1"]) + p["b1"][0]
  h = jax.nn.gelu(h, approximate=True)
  h = jnp.einsum("nhwc,cd->nhwd", h, p["w2"]) + p["b2"][0]
  h = h * p["bn2_s"][0] + p["bn2_b"][0]
  CO = h.shape[-1]
  h = h.reshape(N, H // 2, 2, W // 2, 2, CO).max(axis=(2, 4))
  return jnp.transpose(h, (0, 3, 1, 2))


def init_params(key, C, CO):
  """Deterministic synthetic parameters (conv weights stored channel-last)."""
  C2 = 2 * C
  ks = jax.random.split(key, 4)
  rnd = lambda k, shp, s=0.2: s * jax.random.normal(k, shp, jnp.float32)

  def bn_fold(gamma, beta, mean, var):
    scale = gamma / jnp.sqrt(var + BN_EPS)
    return scale, beta - mean * scale

  s1, sh1 = bn_fold(1.0 + 0.05 * jnp.arange(C2, dtype=jnp.float32),
                    0.03 * jnp.arange(C2, dtype=jnp.float32),
                    0.02 * jnp.arange(C2, dtype=jnp.float32),
                    1.0 + 0.10 * jnp.arange(C2, dtype=jnp.float32))
  s2, sh2 = bn_fold(1.0 + 0.04 * jnp.arange(CO, dtype=jnp.float32),
                    0.02 * jnp.arange(CO, dtype=jnp.float32),
                    0.01 * jnp.arange(CO, dtype=jnp.float32),
                    1.0 + 0.05 * jnp.arange(CO, dtype=jnp.float32))
  return dict(
      w_edm=rnd(ks[0], (C, C)),
      b_edm=jnp.full((1, C), 0.01, jnp.float32),
      wg=rnd(ks[1], (C, C)),
      bg=jnp.full((1, C), 0.02, jnp.float32),
      bn1_s=s1.reshape(1, C2), bn1_b=sh1.reshape(1, C2),
      w1=rnd(ks[2], (C2, CO)),
      b1=0.01 * jnp.arange(CO, dtype=jnp.float32).reshape(1, CO),
      w2=rnd(ks[3], (CO, CO)),
      b2=0.01 * jnp.arange(CO, dtype=jnp.float32).reshape(1, CO),
      bn2_s=s2.reshape(1, CO), bn2_b=sh2.reshape(1, CO),
  )


if __name__ == "__main__":
  key = jax.random.PRNGKey(0)
  kx, kp = jax.random.split(key)
  N, C, H, W, CO = 2, 4, 16, 16, 8

  x = jax.random.normal(kx, (N, C, H, W), jnp.float32)
  params = init_params(kp, C, CO)

  out = jax.block_until_ready(epfm_forward(x, params))
  assert out.shape == (N, CO, H // 2, W // 2), out.shape

  ref = jax.block_until_ready(epfm_reference(x, params))
  max_err = float(jnp.max(jnp.abs(out - ref)))
  assert jnp.allclose(out, ref, atol=2e-2, rtol=2e-2), f"mismatch: {max_err}"

  print("KERNEL_OK")
</pallas_src>

<mosaic_0001>
module attributes {stable_mosaic.version = 11 : i64} {
  func.func @_epfm_kernel(%arg0: i32, %arg1: memref<1x4x256xf32, #tpu.memory_space<vmem>>, %arg2: memref<8x25xf32, #tpu.memory_space<vmem>>, %arg3: memref<4x4xf32, #tpu.memory_space<vmem>>, %arg4: memref<4x1xf32, #tpu.memory_space<vmem>>, %arg5: memref<8x8xf32, #tpu.memory_space<vmem>>, %arg6: memref<8x1xf32, #tpu.memory_space<vmem>>, %arg7: memref<640x128xf32, #tpu.memory_space<vmem>>, %arg8: memref<1x8x128xf32, #tpu.memory_space<vmem>>, %arg9: memref<25x640xf32, #tpu.memory_space<vmem>>) attributes {dimension_semantics = [#tpu.dimension_semantics<parallel>], iteration_bounds = array<i64: 2>, scalar_prefetch = 0 : i64, scratch_operands = 1 : i64, tpu.core_type = #tpu.core_type<tc>, window_params = [{transform_indices = @transform_0, window_bounds = array<i64: 1, 4, 256>}, {pipeline_mode = #tpu.pipeline_mode<synchronous>, transform_indices = @transform_1, window_bounds = array<i64: 8, 25>}, {pipeline_mode = #tpu.pipeline_mode<synchronous>, transform_indices = @transform_2, window_bounds = array<i64: 4, 4>}, {pipeline_mode = #tpu.pipeline_mode<synchronous>, transform_indices = @transform_3, window_bounds = array<i64: 4, 1>}, {pipeline_mode = #tpu.pipeline_mode<synchronous>, transform_indices = @transform_4, window_bounds = array<i64: 8, 8>}, {pipeline_mode = #tpu.pipeline_mode<synchronous>, transform_indices = @transform_5, window_bounds = array<i64: 8, 1>}, {pipeline_mode = #tpu.pipeline_mode<synchronous>, transform_indices = @transform_6, window_bounds = array<i64: 640, 128>}, {transform_indices = @transform_7, window_bounds = array<i64: 1, 8, 128>}]} {
    %cst = arith.constant 0.000000e+00 : f32
    %0 = vector.broadcast %cst : f32 to vector<25x640xf32>
    %c0 = arith.constant 0 : index
    %c0_0 = arith.constant 0 : index
    %1 = vector.load %arg9[%c0, %c0_0] : memref<25x640xf32, #tpu.memory_space<vmem>>, vector<25x640xf32>
    tpu.vector_store %arg9[%c0, %c0_0], %0 {strides = array<i32>} : memref<25x640xf32, #tpu.memory_space<vmem>>, vector<25x640xf32>,
    %c0_1 = arith.constant 0 : index
    %c0_2 = arith.constant 0 : index
    %c0_3 = arith.constant 0 : index
    %2 = vector.load %arg1[%c0_1, %c0_2, %c0_3] : memref<1x4x256xf32, #tpu.memory_space<vmem>>, vector<1x4x256xf32>
    %3 = vector.shape_cast %2 : vector<1x4x256xf32> to vector<4x256xf32>
    %4 = vector.extract_strided_slice %3 {offsets = [0, 0], sizes = [4, 16], strides = [1, 1]} : vector<4x256xf32> to vector<4x16xf32>
    %c8 = arith.constant 8 : index
    %c100 = arith.constant 100 : index
    %5 = vector.load %arg9[%c8, %c100] : memref<25x640xf32, #tpu.memory_space<vmem>>, vector<4x16xf32>
    tpu.vector_store %arg9[%c8, %c100], %4 {strides = array<i32>} : memref<25x640xf32, #tpu.memory_space<vmem>>, vector<4x16xf32>,
    %6 = vector.extract_strided_slice %3 {offsets = [0, 16], sizes = [4, 16], strides = [1, 1]} : vector<4x256xf32> to vector<4x16xf32>
    %c8_4 = arith.constant 8 : index
    %c124 = arith.constant 124 : index
    %7 = vector.load %arg9[%c8_4, %c124] : memref<25x640xf32, #tpu.memory_space<vmem>>, vector<4x16xf32>
    tpu.vector_store %arg9[%c8_4, %c124], %6 {strides = array<i32>} : memref<25x640xf32, #tpu.memory_space<vmem>>, vector<4x16xf32>,
    %8 = vector.extract_strided_slice %3 {offsets = [0, 32], sizes = [4, 16], strides = [1, 1]} : vector<4x256xf32> to vector<4x16xf32>
    %c8_5 = arith.constant 8 : index
    %c148 = arith.constant 148 : index
    %9 = vector.load %arg9[%c8_5, %c148] : memref<25x640xf32, #tpu.memory_space<vmem>>, vector<4x16xf32>
    tpu.vector_store %arg9[%c8_5, %c148], %8 {strides = array<i32>} : memref<25x640xf32, #tpu.memory_space<vmem>>, vector<4x16xf32>,
    %10 = vector.extract_strided_slice %3 {offsets = [0, 48], sizes = [4, 16], strides = [1, 1]} : vector<4x256xf32> to vector<4x16xf32>
    %c8_6 = arith.constant 8 : index
    %c172 = arith.constant 172 : index
    %11 = vector.load %arg9[%c8_6, %c172] : memref<25x640xf32, #tpu.memory_space<vmem>>, vector<4x16xf32>
    tpu.vector_store %arg9[%c8_6, %c172], %10 {strides = array<i32>} : memref<25x640xf32, #tpu.memory_space<vmem>>, vector<4x16xf32>,
    %12 = vector.extract_strided_slice %3 {offsets = [0, 64], sizes = [4, 16], strides = [1, 1]} : vector<4x256xf32> to vector<4x16xf32>
    %c8_7 = arith.constant 8 : index
    %c196 = arith.constant 196 : index
    %13 = vector.load %arg9[%c8_7, %c196] : memref<25x640xf32, #tpu.memory_space<vmem>>, vector<4x16xf32>
    tpu.vector_store %arg9[%c8_7, %c196], %12 {strides = array<i32>} : memref<25x640xf32, #tpu.memory_space<vmem>>, vector<4x16xf32>,
    %14 = vector.extract_strided_slice %3 {offsets = [0, 80], sizes = [4, 16], strides = [1, 1]} : vector<4x256xf32> to vector<4x16xf32>
    %c8_8 = arith.constant 8 : index
    %c220 = arith.constant 220 : index
    %15 = vector.load %arg9[%c8_8, %c220] : memref<25x640xf32, #tpu.memory_space<vmem>>, vector<4x16xf32>
    tpu.vector_store %arg9[%c8_8, %c220], %14 {strides = array<i32>} : memref<25x640xf32, #tpu.memory_space<vmem>>, vector<4x16xf32>,
    %16 = vector.extract_strided_slice %3 {offsets = [0, 96], sizes = [4, 16], strides = [1, 1]} : vector<4x256xf32> to vector<4x16xf32>
    %c8_9 = arith.constant 8 : index
    %c244 = arith.constant 244 : index
    %17 = vector.load %arg9[%c8_9, %c244] : memref<25x640xf32, #tpu.memory_space<vmem>>, vector<4x16xf32>
    tpu.vector_store %arg9[%c8_9, %c244], %16 {strides = array<i32>} : memref<25x640xf32, #tpu.memory_space<vmem>>, vector<4x16xf32>,
    %18 = vector.extract_strided_slice %3 {offsets = [0, 112], sizes = [4, 16], strides = [1, 1]} : vector<4x256xf32> to vector<4x16xf32>
    %c8_10 = arith.constant 8 : index
    %c268 = arith.constant 268 : index
    %19 = vector.load %arg9[%c8_10, %c268] : memref<25x640xf32, #tpu.memory_space<vmem>>, vector<4x16xf32>
    tpu.vector_store %arg9[%c8_10, %c268], %18 {strides = array<i32>} : memref<25x640xf32, #tpu.memory_space<vmem>>, vector<4x16xf32>,
    %20 = vector.extract_strided_slice %3 {offsets = [0, 128], sizes = [4, 16], strides = [1, 1]} : vector<4x256xf32> to vector<4x16xf32>
    %c8_11 = arith.constant 8 : index
    %c292 = arith.constant 292 : index
    %21 = vector.load %arg9[%c8_11, %c292] : memref<25x640xf32, #tpu.memory_space<vmem>>, vector<4x16xf32>
    tpu.vector_store %arg9[%c8_11, %c292], %20 {strides = array<i32>} : memref<25x640xf32, #tpu.memory_space<vmem>>, vector<4x16xf32>,
    %22 = vector.extract_strided_slice %3 {offsets = [0, 144], sizes = [4, 16], strides = [1, 1]} : vector<4x256xf32> to vector<4x16xf32>
    %c8_12 = arith.constant 8 : index
    %c316 = arith.constant 316 : index
    %23 = vector.load %arg9[%c8_12, %c316] : memref<25x640xf32, #tpu.memory_space<vmem>>, vector<4x16xf32>
    tpu.vector_store %arg9[%c8_12, %c316], %22 {strides = array<i32>} : memref<25x640xf32, #tpu.memory_space<vmem>>, vector<4x16xf32>,
    %24 = vector.extract_strided_slice %3 {offsets = [0, 160], sizes = [4, 16], strides = [1, 1]} : vector<4x256xf32> to vector<4x16xf32>
    %c8_13 = arith.constant 8 : index
    %c340 = arith.constant 340 : index
    %25 = vector.load %arg9[%c8_13, %c340] : memref<25x640xf32, #tpu.memory_space<vmem>>, vector<4x16xf32>
    tpu.vector_store %arg9[%c8_13, %c340], %24 {strides = array<i32>} : memref<25x640xf32, #tpu.memory_space<vmem>>, vector<4x16xf32>,
    %26 = vector.extract_strided_slice %3 {offsets = [0, 176], sizes = [4, 16], strides = [1, 1]} : vector<4x256xf32> to vector<4x16xf32>
    %c8_14 = arith.constant 8 : index
    %c364 = arith.constant 364 : index
    %27 = vector.load %arg9[%c8_14, %c364] : memref<25x640xf32, #tpu.memory_space<vmem>>, vector<4x16xf32>
    tpu.vector_store %arg9[%c8_14, %c364], %26 {strides = array<i32>} : memref<25x640xf32, #tpu.memory_space<vmem>>, vector<4x16xf32>,
    %28 = vector.extract_strided_slice %3 {offsets = [0, 192], sizes = [4, 16], strides = [1, 1]} : vector<4x256xf32> to vector<4x16xf32>
    %c8_15 = arith.constant 8 : index
    %c388 = arith.constant 388 : index
    %29 = vector.load %arg9[%c8_15, %c388] : memref<25x640xf32, #tpu.memory_space<vmem>>, vector<4x16xf32>
    tpu.vector_store %arg9[%c8_15, %c388], %28 {strides = array<i32>} : memref<25x640xf32, #tpu.memory_space<vmem>>, vector<4x16xf32>,
    %30 = vector.extract_strided_slice %3 {offsets = [0, 208], sizes = [4, 16], strides = [1, 1]} : vector<4x256xf32> to vector<4x16xf32>
    %c8_16 = arith.constant 8 : index
    %c412 = arith.constant 412 : index
    %31 = vector.load %arg9[%c8_16, %c412] : memref<25x640xf32, #tpu.memory_space<vmem>>, vector<4x16xf32>
    tpu.vector_store %arg9[%c8_16, %c412], %30 {strides = array<i32>} : memref<25x640xf32, #tpu.memory_space<vmem>>, vector<4x16xf32>,
    %32 = vector.extract_strided_slice %3 {offsets = [0, 224], sizes = [4, 16], strides = [1, 1]} : vector<4x256xf32> to vector<4x16xf32>
    %c8_17 = arith.constant 8 : index
    %c436 = arith.constant 436 : index
    %33 = vector.load %arg9[%c8_17, %c436] : memref<25x640xf32, #tpu.memory_space<vmem>>, vector<4x16xf32>
    tpu.vector_store %arg9[%c8_17, %c436], %32 {strides = array<i32>} : memref<25x640xf32, #tpu.memory_space<vmem>>, vector<4x16xf32>,
    %34 = vector.extract_strided_slice %3 {offsets = [0, 240], sizes = [4, 16], strides = [1, 1]} : vector<4x256xf32> to vector<4x16xf32>
    %c8_18 = arith.constant 8 : index
    %c460 = arith.constant 460 : index
    %35 = vector.load %arg9[%c8_18, %c460] : memref<25x640xf32, #tpu.memory_space<vmem>>, vector<4x16xf32>
    tpu.vector_store %arg9[%c8_18, %c460], %34 {strides = array<i32>} : memref<25x640xf32, #tpu.memory_space<vmem>>, vector<4x16xf32>,
    %c8_19 = arith.constant 8 : index
    %c0_20 = arith.constant 0 : index
    %36 = vector.load %arg9[%c8_19, %c0_20] : memref<25x640xf32, #tpu.memory_space<vmem>>, vector<4x640xf32>
    %c639_i32 = arith.constant 639 : i32
    %37 = tpu.dynamic_rotate %36 by %c639_i32 dim 1 : vector<4x640xf32>, i32 -> vector<4x640xf32>
    %38 = arith.addf %36, %37 : vector<4x640xf32>
    %c1_i32 = arith.constant 1 : i32
    %39 = tpu.dynamic_rotate %36 by %c1_i32 dim 1 : vector<4x640xf32>, i32 -> vector<4x640xf32>
    %40 = arith.addf %38, %39 : vector<4x640xf32>
    %c616_i32 = arith.constant 616 : i32
    %41 = tpu.dynamic_rotate %40 by %c616_i32 dim 1 : vector<4x640xf32>, i32 -> vector<4x640xf32>
    %42 = arith.addf %40, %41 : vector<4x640xf32>
    %c24_i32 = arith.constant 24 : i32
    %43 = tpu.dynamic_rotate %40 by %c24_i32 dim 1 : vector<4x640xf32>, i32 -> vector<4x640xf32>
    %44 = arith.addf %42, %43 : vector<4x640xf32>
    %c637_i32 = arith.constant 637 : i32
    %45 = tpu.dynamic_rotate %40 by %c637_i32 dim 1 : vector<4x640xf32>, i32 -> vector<4x640xf32>
    %46 = arith.addf %40, %45 : vector<4x640xf32>
    %c3_i32 = arith.constant 3 : i32
    %47 = tpu.dynamic_rotate %40 by %c3_i32 dim 1 : vector<4x640xf32>, i32 -> vector<4x640xf32>
    %48 = arith.addf %46, %47 : vector<4x640xf32>
    %c616_i32_21 = arith.constant 616 : i32
    %49 = tpu.dynamic_rotate %48 by %c616_i32_21 dim 1 : vector<4x640xf32>, i32 -> vector<4x640xf32>
    %50 = arith.addf %48, %49 : vector<4x640xf32>
    %c24_i32_22 = arith.constant 24 : i32
    %51 = tpu.dynamic_rotate %48 by %c24_i32_22 dim 1 : vector<4x640xf32>, i32 -> vector<4x640xf32>
    %52 = arith.addf %50, %51 : vector<4x640xf32>
    %c568_i32 = arith.constant 568 : i32
    %53 = tpu.dynamic_rotate %52 by %c568_i32 dim 1 : vector<4x640xf32>, i32 -> vector<4x640xf32>
    %54 = arith.addf %52, %53 : vector<4x640xf32>
    %c72_i32 = arith.constant 72 : i32
    %55 = tpu.dynamic_rotate %52 by %c72_i32 dim 1 : vector<4x640xf32>, i32 -> vector<4x640xf32>
    %56 = arith.addf %54, %55 : vector<4x640xf32>
    %cst_23 = arith.constant 0.111111112 : f32
    %57 = vector.broadcast %cst_23 : f32 to vector<4x640xf32>
    %58 = arith.mulf %44, %57 : vector<4x640xf32>
    %59 = arith.subf %36, %58 : vector<4x640xf32>
    %cst_24 = arith.constant 0.0123456791 : f32
    %60 = vector.broadcast %cst_24 : f32 to vector<4x640xf32>
    %61 = arith.mulf %56, %60 : vector<4x640xf32>
    %62 = arith.subf %36, %61 : vector<4x640xf32>
    %63 = arith.addf %59, %62 : vector<4x640xf32>
    %cst_25 = arith.constant dense<0.000000e+00> : vector<4xf32>
    %64 = vector.multi_reduction <add>, %36, %cst_25 [1] : vector<4x640xf32> to vector<4xf32>
    %65 = vector.shape_cast %64 : vector<4xf32> to vector<4x1xf32>
    %cst_26 = arith.constant 3.906250e-03 : f32
    %66 = vector.broadcast %cst_26 : f32 to vector<4x1xf32>
    %67 = arith.mulf %65, %66 : vector<4x1xf32>
    %68 = vector.shape_cast %67 : vector<4x1xf32> to vector<4x1xf32>
    %69 = vector.broadcast %68 : vector<4x1xf32> to vector<4x128xf32>
    %c0_27 = arith.constant 0 : index
    %c0_28 = arith.constant 0 : index
    %70 = vector.load %arg3[%c0_27, %c0_28] : memref<4x4xf32, #tpu.memory_space<vmem>>, vector<4x4xf32>
    %cst_29 = arith.constant dense<0.000000e+00> : vector<4x128xf32>
    %71 = tpu.matmul %70, %69, %cst_29 {dimension_numbers = #tpu.dot_dimension_numbers<[1], [0], [0], [1], [0, 0, 1, 1], [], []>} : vector<4x4xf32>, vector<4x128xf32>, vector<4x128xf32> -> vector<4x128xf32>
    %72 = vector.extract_strided_slice %71 {offsets = [0, 0], sizes = [4, 1], strides = [1, 1]} : vector<4x128xf32> to vector<4x1xf32>
    %c0_30 = arith.constant 0 : index
    %c0_31 = arith.constant 0 : index
    %73 = vector.load %arg4[%c0_30, %c0_31] : memref<4x1xf32, #tpu.memory_space<vmem>>, vector<4x1xf32>
    %74 = arith.addf %72, %73 : vector<4x1xf32>
    %75 = arith.negf %74 : vector<4x1xf32>
    %76 = math.exp %75 : vector<4x1xf32>
    %cst_32 = arith.constant 1.000000e+00 : f32
    %77 = vector.broadcast %cst_32 : f32 to vector<4x1xf32>
    %78 = arith.addf %77, %76 : vector<4x1xf32>
    %79 = arith.divf %77, %78 : vector<4x1xf32>
    %80 = vector.broadcast %79 : vector<4x1xf32> to vector<4x640xf32>
    %81 = arith.mulf %36, %80 : vector<4x640xf32>
    %c0_33 = arith.constant 0 : index
    %c0_34 = arith.constant 0 : index
    %82 = vector.load %arg9[%c0_33, %c0_34] : memref<25x640xf32, #tpu.memory_space<vmem>>, vector<4x640xf32>
    tpu.vector_store %arg9[%c0_33, %c0_34], %63 {strides = array<i32>} : memref<25x640xf32, #tpu.memory_space<vmem>>, vector<4x640xf32>,
    %c16 = arith.constant 16 : index
    %c0_35 = arith.constant 0 : index
    %83 = vector.load %arg9[%c16, %c0_35] : memref<25x640xf32, #tpu.memory_space<vmem>>, vector<4x640xf32>
    tpu.vector_store %arg9[%c16, %c0_35], %81 {strides = array<i32>} : memref<25x640xf32, #tpu.memory_space<vmem>>, vector<4x640xf32>,
    %cst_36 = arith.constant 1.000000e+00 : f32
    %84 = vector.broadcast %cst_36 : f32 to vector<1x640xf32>
    %c24 = arith.constant 24 : index
    %c0_37 = arith.constant 0 : index
    %85 = vector.load %arg9[%c24, %c0_37] : memref<25x640xf32, #tpu.memory_space<vmem>>, vector<1x640xf32>
    tpu.vector_store %arg9[%c24, %c0_37], %84 {strides = array<i32>} : memref<25x640xf32, #tpu.memory_space<vmem>>, vector<1x640xf32>,
    %c0_38 = arith.constant 0 : index
    %c0_39 = arith.constant 0 : index
    %86 = vector.load %arg2[%c0_38, %c0_39] : memref<8x25xf32, #tpu.memory_space<vmem>>, vector<8x25xf32>
    %c0_40 = arith.constant 0 : index
    %c0_41 = arith.constant 0 : index
    %87 = vector.load %arg9[%c0_40, %c0_41] : memref<25x640xf32, #tpu.memory_space<vmem>>, vector<25x640xf32>
    %cst_42 = arith.constant dense<0.000000e+00> : vector<8x640xf32>
    %88 = tpu.matmul %86, %87, %cst_42 {dimension_numbers = #tpu.dot_dimension_numbers<[1], [0], [0], [1], [0, 0, 1, 1], [], []>} : vector<8x25xf32>, vector<25x640xf32>, vector<8x640xf32> -> vector<8x640xf32>
    %89 = arith.mulf %88, %88 : vector<8x640xf32>
    %90 = arith.mulf %88, %89 : vector<8x640xf32>
    %cst_43 = arith.constant 4.471500e-02 : f32
    %91 = vector.broadcast %cst_43 : f32 to vector<8x640xf32>
    %92 = arith.mulf %91, %90 : vector<8x640xf32>
    %93 = arith.addf %88, %92 : vector<8x640xf32>
    %cst_44 = arith.constant 0.797884583 : f32
    %94 = vector.broadcast %cst_44 : f32 to vector<8x640xf32>
    %95 = arith.mulf %94, %93 : vector<8x640xf32>
    %96 = math.tanh %95 : vector<8x640xf32>
    %cst_45 = arith.constant 1.000000e+00 : f32
    %97 = vector.broadcast %cst_45 : f32 to vector<8x640xf32>
    %98 = arith.addf %97, %96 : vector<8x640xf32>
    %cst_46 = arith.constant 5.000000e-01 : f32
    %99 = vector.broadcast %cst_46 : f32 to vector<8x640xf32>
    %100 = arith.mulf %99, %98 : vector<8x640xf32>
    %101 = arith.mulf %88, %100 : vector<8x640xf32>
    %c0_47 = arith.constant 0 : index
    %c0_48 = arith.constant 0 : index
    %102 = vector.load %arg5[%c0_47, %c0_48] : memref<8x8xf32, #tpu.memory_space<vmem>>, vector<8x8xf32>
    %cst_49 = arith.constant dense<0.000000e+00> : vector<8x640xf32>
    %103 = tpu.matmul %102, %101, %cst_49 {dimension_numbers = #tpu.dot_dimension_numbers<[1], [0], [0], [1], [0, 0, 1, 1], [], []>} : vector<8x8xf32>, vector<8x640xf32>, vector<8x640xf32> -> vector<8x640xf32>
    %c639_i32_50 = arith.constant 639 : i32
    %104 = tpu.dynamic_rotate %103 by %c639_i32_50 dim 1 : vector<8x640xf32>, i32 -> vector<8x640xf32>
    %105 = arith.maximumf %103, %104 : vector<8x640xf32>
    %c616_i32_51 = arith.constant 616 : i32
    %106 = tpu.dynamic_rotate %105 by %c616_i32_51 dim 1 : vector<8x640xf32>, i32 -> vector<8x640xf32>
    %107 = arith.maximumf %105, %106 : vector<8x640xf32>
    %c0_52 = arith.constant 0 : index
    %c0_53 = arith.constant 0 : index
    %108 = vector.load %arg7[%c0_52, %c0_53] : memref<640x128xf32, #tpu.memory_space<vmem>>, vector<640x128xf32>
    %cst_54 = arith.constant dense<0.000000e+00> : vector<8x128xf32>
    %109 = tpu.matmul %107, %108, %cst_54 {dimension_numbers = #tpu.dot_dimension_numbers<[1], [0], [0], [1], [0, 0, 1, 1], [], []>} : vector<8x640xf32>, vector<640x128xf32>, vector<8x128xf32> -> vector<8x128xf32>
    %c0_55 = arith.constant 0 : index
    %c0_56 = arith.constant 0 : index
    %110 = vector.load %arg6[%c0_55, %c0_56] : memref<8x1xf32, #tpu.memory_space<vmem>>, vector<8x1xf32>
    %111 = vector.broadcast %110 : vector<8x1xf32> to vector<8x128xf32>
    %112 = arith.addf %109, %111 : vector<8x128xf32>
    %c0_57 = arith.constant 0 : index
    %c0_58 = arith.constant 0 : index
    %c0_59 = arith.constant 0 : index
    %113 = vector.load %arg8[%c0_57, %c0_58, %c0_59] : memref<1x8x128xf32, #tpu.memory_space<vmem>>, vector<1x8x128xf32>
    %114 = vector.shape_cast %113 : vector<1x8x128xf32> to vector<8x128xf32>
    %115 = vector.shape_cast %112 : vector<8x128xf32> to vector<1x8x128xf32>
    tpu.vector_store %arg8[%c0_57, %c0_58, %c0_59], %115 {strides = array<i32>} : memref<1x8x128xf32, #tpu.memory_space<vmem>>, vector<1x8x128xf32>,
    return
  }
  func.func @transform_0(%arg0: i32) -> (i32, i32, i32) {
    %c0_i32 = arith.constant 0 : i32
    %c0_i32_0 = arith.constant 0 : i32
    %c0_i32_1 = arith.constant 0 : i32
    return %arg0, %c0_i32, %c0_i32_0 : i32, i32, i32
  }
  func.func @transform_1(%arg0: i32) -> (i32, i32) {
    %c0_i32 = arith.constant 0 : i32
    %c0_i32_0 = arith.constant 0 : i32
    %c0_i32_1 = arith.constant 0 : i32
    return %c0_i32, %c0_i32_0 : i32, i32
  }
  func.func @transform_2(%arg0: i32) -> (i32, i32) {
    %c0_i32 = arith.constant 0 : i32
    %c0_i32_0 = arith.constant 0 : i32
    %c0_i32_1 = arith.constant 0 : i32
    return %c0_i32, %c0_i32_0 : i32, i32
  }
  func.func @transform_3(%arg0: i32) -> (i32, i32) {
    %c0_i32 = arith.constant 0 : i32
    %c0_i32_0 = arith.constant 0 : i32
    %c0_i32_1 = arith.constant 0 : i32
    return %c0_i32, %c0_i32_0 : i32, i32
  }
  func.func @transform_4(%arg0: i32) -> (i32, i32) {
    %c0_i32 = arith.constant 0 : i32
    %c0_i32_0 = arith.constant 0 : i32
    %c0_i32_1 = arith.constant 0 : i32
    return %c0_i32, %c0_i32_0 : i32, i32
  }
  func.func @transform_5(%arg0: i32) -> (i32, i32) {
    %c0_i32 = arith.constant 0 : i32
    %c0_i32_0 = arith.constant 0 : i32
    %c0_i32_1 = arith.constant 0 : i32
    return %c0_i32, %c0_i32_0 : i32, i32
  }
  func.func @transform_6(%arg0: i32) -> (i32, i32) {
    %c0_i32 = arith.constant 0 : i32
    %c0_i32_0 = arith.constant 0 : i32
    %c0_i32_1 = arith.constant 0 : i32
    return %c0_i32, %c0_i32_0 : i32, i32
  }
  func.func @transform_7(%arg0: i32) -> (i32, i32, i32) {
    %c0_i32 = arith.constant 0 : i32
    %c0_i32_0 = arith.constant 0 : i32
    %c0_i32_1 = arith.constant 0 : i32
    return %arg0, %c0_i32, %c0_i32_0 : i32, i32, i32
  }
}

</mosaic_0001>

<llo_original>
// kernel: tpu_custom_call.1
$region0: #{tpu_custom_call.1}
  #allocation0 [shape = 'u32[]', space=smem, size = 0x4, offset = 0x4, fixed_abs, tag = 'smem constant byte address 0x4 - core index']
  #allocation1 [shape = 'u32[144,128]{1,0:T(1,128)}', space=vmem, size = 0x12000, scoped, tag = 'internal scratch']
  #allocation2 [shape = 'f32[25,640]{1,0:T(8,128)}', space=vmem, size = 0x14000, scoped, tag = 'scratch operand']
  %s0 = inlined_call_operand.hbm [shape: f32[2,4,256], index: 0, kind: input, shape index: {}]
  %s1 = inlined_call_operand.vmem [shape: f32[8,25], index: 1, kind: input, shape index: {}]
  %s2 = inlined_call_operand.vmem [shape: f32[4,4], index: 2, kind: input, shape index: {}]
  %s3 = inlined_call_operand.vmem [shape: f32[4,1], index: 3, kind: input, shape index: {}]
  %s4 = inlined_call_operand.vmem [shape: f32[8,8], index: 4, kind: input, shape index: {}]
  %s5 = inlined_call_operand.vmem [shape: f32[8,1], index: 5, kind: input, shape index: {}]
  %s6 = inlined_call_operand.hbm [shape: f32[640,128], index: 6, kind: input, shape index: {}]
  %s7 = inlined_call_operand.hbm [shape: f32[2,8,128], index: 7, kind: output, shape index: {}]
  %s8 = sld [smem:[#allocation0]]
  $region69: #{tpu_custom_call.1} parent=0
    _
  %s10 = ssub.s32 1, %s8
  %s11 = scalar_select 0, %s10, %s8
  $region1: #{tpu_custom_call.1} parent=0
    #allocation3 [shape = 'u8[8192]{0}', space=vmem, size = 0x2000, scoped, tag = 'input window, operand 0']
    #allocation4 [shape = 's32[2]{0}', space=sflag, size = 0x8, scoped, tag = 'scoped memory for tpu_custom_call.1']
    #allocation5 [shape = 's32[2]{0}', space=sflag, size = 0x8, scoped, tag = 'scoped memory for tpu_custom_call.1']
    #allocation6 [shape = 'u8[327680]{0}', space=vmem, size = 0x50000, scoped, tag = 'input window, operand 6, single buffered']
    #allocation7 [shape = 's32[1]{0}', space=sflag, size = 0x4, scoped, tag = 'scoped memory for tpu_custom_call.1']
    #allocation8 [shape = 'u8[8192]{0}', space=vmem, size = 0x2000, scoped, tag = 'output window, operand 0']
    %12 = vsyncpa [#allocation4], 0
    %s13 = scalar_lea.sflag [#allocation4], 1
    %14 = vsyncpa %s13, 0
    %15 = vsyncpa [#allocation7], 0
    %16 = vsyncpa [#allocation5], 0
    %s17 = scalar_lea.sflag [#allocation5], 1
    %18 = vsyncpa %s17, 0
    loop: start=0, step=1, limit=4
    $region2: #{tpu_custom_call.1} parent=1 // loop_pre_header
      _
    $region3: #{tpu_custom_call.1} parent=1 // loop_header
      %s20 = sphi 0, %s24
      %p21 = scmp.ge.s32.totalorder %s20, 4
      %s30 = sphi 0, %s32
      %s33 = sphi 0, %s30
      %s34 = sphi 0, %s33
      %s50 = sphi 0, %s34
      %s54 = sphi 0, %s54
      %s56 = sphi 0, %s54
      %s57 = sphi 0, %s56
      %s71 = sphi 0, %s57
      %s75 = sphi 0, %s75
      %s77 = sphi 0, %s75
      %s78 = sphi 0, %s77
      %s92 = sphi 0, %s78
      %s96 = sphi 0, %s96
      %s98 = sphi 0, %s96
      %s99 = sphi 0, %s98
      %s113 = sphi 0, %s99
      %s117 = sphi 0, %s117
      %s119 = sphi 0, %s117
      %s120 = sphi 0, %s119
      %s134 = sphi 0, %s120
      %s138 = sphi 0, %s138
      %s140 = sphi 0, %s138
      %s141 = sphi 0, %s140
      %s155 = sphi 0, %s141
      %s159 = sphi 0, %s159
      %s161 = sphi 0, %s159
      %s162 = sphi 0, %s161
      %s176 = sphi 0, %s162
      %s182 = sphi 0, %s184
      %s185 = sphi 0, %s182
      %s186 = sphi 0, %s185
      %s202 = sphi 0, %s186
    $region4: #{tpu_custom_call.1} parent=1 // loop_header_branch
      %23 = sbr.rel (%p21) target = $region8
    $region5: #{tpu_custom_call.1} parent=1 // loop_body
      %s25 = ssub.s32 %s20, 1
      %s26 = ssub.s32 %s20, 2
      %s27 = sadd.s32 %s20, 1
      %s28 = ssub.s32 %s20, %s27
      %p29 = scmp.eq.s32.totalorder %s28, 0
      %s31 = sadd.s32 %s30, 1
      %s32 = scalar_select %p29, %s30, %s31
      %p35 = pneg %p29
      %p36 = scmp.eq.s32.totalorder %s20, 1
      %p37 = por %p35, %p36
      %p38 = scmp.ne.s32.totalorder %s30, %s33
      %p39 = scmp.eq.s32.totalorder %s20, 0
      %p40 = por %p38, %p39
      %p41 = scmp.ne.s32.totalorder %s30, %s33
      %p42 = scmp.eq.s32.totalorder %s25, 1
      %p43 = por %p41, %p42
      %p44 = scmp.ne.s32.totalorder %s33, %s34
      %p45 = scmp.eq.s32.totalorder %s25, 0
      %p46 = por %p44, %p45
      %p47 = scmp.ne.s32.totalorder %s33, %s34
      %p48 = scmp.eq.s32.totalorder %s26, 1
      %p49 = por %p47, %p48
      %p51 = scmp.ne.s32.totalorder %s34, %s50
      %p52 = scmp.eq.s32.totalorder %s26, 0
      %p53 = por %p51, %p52
      %s55 = sadd.s32 %s54, 1
      %p58 = scmp.eq.s32.totalorder %s20, 1
      %p59 = scmp.ne.s32.totalorder %s54, %s56
      %p60 = scmp.eq.s32.totalorder %s20, 0
      %p61 = por %p59, %p60
      %p62 = scmp.ne.s32.totalorder %s54, %s56
      %p63 = scmp.eq.s32.totalorder %s25, 1
      %p64 = por %p62, %p63
      %p65 = scmp.ne.s32.totalorder %s56, %s57
      %p66 = scmp.eq.s32.totalorder %s25, 0
      %p67 = por %p65, %p66
      %p68 = scmp.ne.s32.totalorder %s56, %s57
      %p69 = scmp.eq.s32.totalorder %s26, 1
      %p70 = por %p68, %p69
      %p72 = scmp.ne.s32.totalorder %s57, %s71
      %p73 = scmp.eq.s32.totalorder %s26, 0
      %p74 = por %p72, %p73
      %s76 = sadd.s32 %s75, 1
      %p79 = scmp.eq.s32.totalorder %s20, 1
      %p80 = scmp.ne.s32.totalorder %s75, %s77
      %p81 = scmp.eq.s32.totalorder %s20, 0
      %p82 = por %p80, %p81
      %p83 = scmp.ne.s32.totalorder %s75, %s77
      %p84 = scmp.eq.s32.totalorder %s25, 1
      %p85 = por %p83, %p84
      %p86 = scmp.ne.s32.totalorder %s77, %s78
      %p87 = scmp.eq.s32.totalorder %s25, 0
      %p88 = por %p86, %p87
      %p89 = scmp.ne.s32.totalorder %s77, %s78
      %p90 = scmp.eq.s32.totalorder %s26, 1
      %p91 = por %p89, %p90
      %p93 = scmp.ne.s32.totalorder %s78, %s92
      %p94 = scmp.eq.s32.totalorder %s26, 0
      %p95 = por %p93, %p94
      %s97 = sadd.s32 %s96, 1
      %p100 = scmp.eq.s32.totalorder %s20, 1
      %p101 = scmp.ne.s32.totalorder %s96, %s98
      %p102 = scmp.eq.s32.totalorder %s20, 0
      %p103 = por %p101, %p102
      %p104 = scmp.ne.s32.totalorder %s96, %s98
      %p105 = scmp.eq.s32.totalorder %s25, 1
      %p106 = por %p104, %p105
      %p107 = scmp.ne.s32.totalorder %s98, %s99
      %p108 = scmp.eq.s32.totalorder %s25, 0
      %p109 = por %p107, %p108
      %p110 = scmp.ne.s32.totalorder %s98, %s99
      %p111 = scmp.eq.s32.totalorder %s26, 1
      %p112 = por %p110, %p111
      %p114 = scmp.ne.s32.totalorder %s99, %s113
      %p115 = scmp.eq.s32.totalorder %s26, 0
      %p116 = por %p114, %p115
      %s118 = sadd.s32 %s117, 1
      %p121 = scmp.eq.s32.totalorder %s20, 1
      %p122 = scmp.ne.s32.totalorder %s117, %s119
      %p123 = scmp.eq.s32.totalorder %s20, 0
      %p124 = por %p122, %p123
      %p125 = scmp.ne.s32.totalorder %s117, %s119
      %p126 = scmp.eq.s32.totalorder %s25, 1
      %p127 = por %p125, %p126
      %p128 = scmp.ne.s32.totalorder %s119, %s120
      %p129 = scmp.eq.s32.totalorder %s25, 0
      %p130 = por %p128, %p129
      %p131 = scmp.ne.s32.totalorder %s119, %s120
      %p132 = scmp.eq.s32.totalorder %s26, 1
      %p133 = por %p131, %p132
      %p135 = scmp.ne.s32.totalorder %s120, %s134
      %p136 = scmp.eq.s32.totalorder %s26, 0
      %p137 = por %p135, %p136
      %s139 = sadd.s32 %s138, 1
      %p142 = scmp.eq.s32.totalorder %s20, 1
      %p143 = scmp.ne.s32.totalorder %s138, %s140
      %p144 = scmp.eq.s32.totalorder %s20, 0
      %p145 = por %p143, %p144
      %p146 = scmp.ne.s32.totalorder %s138, %s140
      %p147 = scmp.eq.s32.totalorder %s25, 1
      %p148 = por %p146, %p147
      %p149 = scmp.ne.s32.totalorder %s140, %s141
      %p150 = scmp.eq.s32.totalorder %s25, 0
      %p151 = por %p149, %p150
      %p152 = scmp.ne.s32.totalorder %s140, %s141
      %p153 = scmp.eq.s32.totalorder %s26, 1
      %p154 = por %p152, %p153
      %p156 = scmp.ne.s32.totalorder %s141, %s155
      %p157 = scmp.eq.s32.totalorder %s26, 0
      %p158 = por %p156, %p157
      %s160 = sadd.s32 %s159, 1
      %p163 = scmp.eq.s32.totalorder %s20, 1
      %p164 = scmp.ne.s32.totalorder %s159, %s161
      %p165 = scmp.eq.s32.totalorder %s20, 0
      %p166 = por %p164, %p165
      %p167 = scmp.ne.s32.totalorder %s159, %s161
      %p168 = scmp.eq.s32.totalorder %s25, 1
      %p169 = por %p167, %p168
      %p170 = scmp.ne.s32.totalorder %s161, %s162
      %p171 = scmp.eq.s32.totalorder %s25, 0
      %p172 = por %p170, %p171
      %p173 = scmp.ne.s32.totalorder %s161, %s162
      %p174 = scmp.eq.s32.totalorder %s26, 1
      %p175 = por %p173, %p174
      %p177 = scmp.ne.s32.totalorder %s162, %s176
      %p178 = scmp.eq.s32.totalorder %s26, 0
      %p179 = por %p177, %p178
      %s180 = ssub.s32 %s20, %s27
      %p181 = scmp.eq.s32.totalorder %s180, 0
      %s183 = sadd.s32 %s182, 1
      %s184 = scalar_select %p181, %s182, %s183
      %p187 = pneg %p181
      %p188 = scmp.eq.s32.totalorder %s20, 1
      %p189 = por %p187, %p188
      %p190 = scmp.ne.s32.totalorder %s182, %s185
      %p191 = scmp.eq.s32.totalorder %s20, 0
      %p192 = por %p190, %p191
      %p193 = scmp.ne.s32.totalorder %s182, %s185
      %p194 = scmp.eq.s32.totalorder %s25, 1
      %p195 = por %p193, %p194
      %p196 = scmp.ne.s32.totalorder %s185, %s186
      %p197 = scmp.eq.s32.totalorder %s25, 0
      %p198 = por %p196, %p197
      %p199 = scmp.ne.s32.totalorder %s185, %s186
      %p200 = scmp.eq.s32.totalorder %s26, 1
      %p201 = por %p199, %p200
      %p203 = scmp.ne.s32.totalorder %s186, %s202
      %p204 = scmp.eq.s32.totalorder %s26, 0
      %p205 = por %p203, %p204
      %p206 = scmp.le.s32.totalorder 1, %s20
      %p207 = scmp.lt.s32.totalorder %s20, 3
      %p208 = pnand %p206, %p207
      %p209 = pneg %p208
      // Predicated region
      $region9: #{tpu_custom_call.1} parent=5 // pred_check
        _
      $region10: #{tpu_custom_call.1} parent=5 // pred_check_branch
        %211 = sbr.rel (%p208) target = $region12
      $region11: #{tpu_custom_call.1} parent=5 // pred_region
        %s212 = ssub.s32 %s20, 1
        // Predicated region
        $region13: #{tpu_custom_call.1} parent=11 // pred_check
          %p213 = pneg %p67
        $region14: #{tpu_custom_call.1} parent=11 // pred_check_branch
          %215 = sbr.rel (%p213) target = $region16
        $region15: #{tpu_custom_call.1} parent=11 // pred_region
          _
        $region16: #{tpu_custom_call.1} parent=11 // pred_fallthru
          _
        // Predicated region
        $region17: #{tpu_custom_call.1} parent=11 // pred_check
          %p216 = pneg %p88
        $region18: #{tpu_custom_call.1} parent=11 // pred_check_branch
          %218 = sbr.rel (%p216) target = $region20
        $region19: #{tpu_custom_call.1} parent=11 // pred_region
          _
        $region20: #{tpu_custom_call.1} parent=11 // pred_fallthru
          _
        // Predicated region
        $region21: #{tpu_custom_call.1} parent=11 // pred_check
          %p219 = pneg %p109
        $region22: #{tpu_custom_call.1} parent=11 // pred_check_branch
          %221 = sbr.rel (%p219) target = $region24
        $region23: #{tpu_custom_call.1} parent=11 // pred_region
          _
        $region24: #{tpu_custom_call.1} parent=11 // pred_fallthru
          _
        // Predicated region
        $region25: #{tpu_custom_call.1} parent=11 // pred_check
          %p222 = pneg %p130
        $region26: #{tpu_custom_call.1} parent=11 // pred_check_branch
          %224 = sbr.rel (%p222) target = $region28
        $region27: #{tpu_custom_call.1} parent=11 // pred_region
          _
        $region28: #{tpu_custom_call.1} parent=11 // pred_fallthru
          _
        // Predicated region
        $region29: #{tpu_custom_call.1} parent=11 // pred_check
          %p225 = pneg %p151
        $region30: #{tpu_custom_call.1} parent=11 // pred_check_branch
          %227 = sbr.rel (%p225) target = $region32
        $region31: #{tpu_custom_call.1} parent=11 // pred_region
          _
        $region32: #{tpu_custom_call.1} parent=11 // pred_fallthru
          _
        // Predicated region
        $region33: #{tpu_custom_call.1} parent=11 // pred_check
          %p228 = pneg %p172
        $region34: #{tpu_custom_call.1} parent=11 // pred_check_branch
          %230 = sbr.rel (%p228) target = $region36
        $region35: #{tpu_custom_call.1} parent=11 // pred_region
          %s232 = ssub.s32 10240, 10240
          %233 = vsyncadd [#allocation7], %s232
          %s234 = sshll.u32 [#allocation6], 4
          %s235 = int_to_ptr.vmem [resolvable:$true] %s234
          %240 = dma.hbm_to_vmem [thread:$0]  %s6, 10240, %s235, [#allocation7], 128, 128, 8
        $region36: #{tpu_custom_call.1} parent=11 // pred_fallthru
          _
      $region12: #{tpu_custom_call.1} parent=5 // pred_fallthru
        _
      %p241 = scmp.lt.s32.totalorder %s20, 2
      // Predicated region
      $region37: #{tpu_custom_call.1} parent=5 // pred_check
        %p242 = pneg %p241
      $region38: #{tpu_custom_call.1} parent=5 // pred_check_branch
        %244 = sbr.rel (%p242) target = $region40
      $region39: #{tpu_custom_call.1} parent=5 // pred_region
        // Predicated region
        $region41: #{tpu_custom_call.1} parent=39 // pred_check
          %p245 = pneg %p40
        $region42: #{tpu_custom_call.1} parent=39 // pred_check_branch
          %247 = sbr.rel (%p245) target = $region44
        $region43: #{tpu_custom_call.1} parent=39 // pred_region
          %s248 = sand.u32 %s30, 1
          %s249 = scalar_lea.sflag [#allocation4], %s248
          %s250 = sand.u32 %s30, 1
          %s251 = smul.addr %s250, 8
          %s252 = scalar_lea.vmem [#allocation3], %s251
          %s254 = ssub.s32 128, 128
          %255 = vsyncadd %s249, %s254
          %s256 = smul.addr %s20, 2
          %s257 = smul.addr %s256, 64
          %s258 = scalar_lea.hbm %s0, %s257
          %s260 = sshll.u32 %s252, 4
          %s261 = int_to_ptr.vmem [resolvable:$true] %s260
          %263 = dma.hbm_to_vmem [thread:$0]  %s258, 128, %s261, %s249
        $region44: #{tpu_custom_call.1} parent=39 // pred_fallthru
          _
      $region40: #{tpu_custom_call.1} parent=5 // pred_fallthru
        _
      %p264 = scmp.le.s32.totalorder 1, %s20
      %p265 = scmp.lt.s32.totalorder %s20, 3
      %p266 = pnand %p264, %p265
      %p267 = pneg %p266
      // Predicated region
      $region45: #{tpu_custom_call.1} parent=5 // pred_check
        _
      $region46: #{tpu_custom_call.1} parent=5 // pred_check_branch
        %269 = sbr.rel (%p266) target = $region48
      $region47: #{tpu_custom_call.1} parent=5 // pred_region
        %s270 = ssub.s32 %s20, 1
        %s271 = sand.u32 %s33, 1
        %s272 = scalar_lea.sflag [#allocation4], %s271
        %s273 = sand.u32 %s33, 1
        %s274 = smul.addr %s273, 8
        %s275 = scalar_lea.vmem [#allocation3], %s274
        // Predicated region
        $region49: #{tpu_custom_call.1} parent=47 // pred_check
          %p276 = pneg %p46
        $region50: #{tpu_custom_call.1} parent=47 // pred_check_branch
          %278 = sbr.rel (%p276) target = $region52
        $region51: #{tpu_custom_call.1} parent=47 // pred_region
          %279 = dma.done %s272, 128
        $region52: #{tpu_custom_call.1} parent=47 // pred_fallthru
          _
        // Predicated region
        $region53: #{tpu_custom_call.1} parent=47 // pred_check
          %p280 = pneg %p172
        $region54: #{tpu_custom_call.1} parent=47 // pred_check_branch
          %282 = sbr.rel (%p280) target = $region56
        $region55: #{tpu_custom_call.1} parent=47 // pred_region
          %283 = dma.done [#allocation7], 10240
        $region56: #{tpu_custom_call.1} parent=47 // pred_fallthru
          _
        %s284 = sand.u32 %s33, 1
        %s285 = scalar_lea.sflag [#allocation4], %s284
        %s286 = sand.u32 %s33, 1
        %s287 = smul.addr %s286, 8
        %s288 = scalar_lea.vmem [#allocation3], %s287
        %p289 = pneg %p46
        %p290 = pneg %p43
        %p291 = pneg %p67
        %p292 = pneg %p64
        %p293 = pneg %p88
        %p294 = pneg %p85
        %p295 = pneg %p109
        %p296 = pneg %p106
        %p297 = pneg %p130
        %p298 = pneg %p127
        %p299 = pneg %p151
        %p300 = pneg %p148
        %p301 = pneg %p172
        %p302 = pneg %p169
        %p303 = pneg %p198
        %p304 = pneg %p195
        %s305 = sand.u32 %s185, 1
        %s306 = scalar_lea.sflag [#allocation5], %s305
        %s307 = sand.u32 %s185, 1
        %s308 = smul.addr %s307, 8
        %s309 = scalar_lea.vmem [#allocation8], %s308
        %310 = vst [vmem:[#allocation2] sm:$0xff] 0.0
        %311 = vst [vmem:[#allocation2 + $0x8] sm:$0xff] 0.0
        %312 = vst [vmem:[#allocation2 + $0x10] sm:$0xff] 0.0
        %313 = vst [vmem:[#allocation2 + $0x18] sm:$0xff] 0.0
        %314 = vst [vmem:[#allocation2 + $0x20] sm:$0xff] 0.0
        %315 = vst [vmem:[#allocation2 + $0x28] sm:$0xff] 0.0
        %316 = vst [vmem:[#allocation2 + $0x30] sm:$0xff] 0.0
        %317 = vst [vmem:[#allocation2 + $0x38] sm:$0xff] 0.0
        %318 = vst [vmem:[#allocation2 + $0x40] sm:$0xff] 0.0
        %319 = vst [vmem:[#allocation2 + $0x48] sm:$0xff] 0.0
        %320 = vst [vmem:[#allocation2 + $0x50] sm:$0xff] 0.0
        %321 = vst [vmem:[#allocation2 + $0x58] sm:$0xff] 0.0
        %322 = vst [vmem:[#allocation2 + $0x60] sm:$0xff] 0.0
        %323 = vst [vmem:[#allocation2 + $0x68] sm:$0xff] 0.0
        %324 = vst [vmem:[#allocation2 + $0x70] sm:$0xff] 0.0
        %325 = vst [vmem:[#allocation2 + $0x78] sm:$0x1] 0.0
        %326 = vst [vmem:[#allocation2 + $0x80] sm:$0x1] 0.0
        %327 = vst [vmem:[#allocation2 + $0x88] sm:$0x1] 0.0
        %328 = vst [vmem:[#allocation2 + $0x90] sm:$0x1] 0.0
        %329 = vst [vmem:[#allocation2 + $0x98] sm:$0x1] 0.0
        %v330 = vld [vmem:[%s275] sm:$0xff]
        %332 = vrot.lane.b32.xlu0 %v330, 100
        %v333 = vpop.permute.xlu0 %332
        %vm335 = vcmask 945952
        %336 = vst.msk [vmem:[#allocation2 + $0x28] sm:$0xf] %vm335, %v333
        %337 = vrot.lane.b32.xlu0 %v330, 108
        %v338 = vpop.permute.xlu0 %337
        %vm340 = vcmask 1044448
        %341 = vst.msk [vmem:[#allocation2 + $0x28] sm:$0xf] %vm340, %v338
        %vm342 = vcmask 93184
        %343 = vst.msk [vmem:[#allocation2 + $0x30] sm:$0xf] %vm342, %v338
        %344 = vrot.lane.b32.xlu0 %v330, 116
        %v345 = vpop.permute.xlu0 %344
        %vm347 = vcmask 289952
        %348 = vst.msk [vmem:[#allocation2 + $0x30] sm:$0xf] %vm347, %v345
        %349 = vrot.lane.b32.xlu0 %v330, 124
        %v350 = vpop.permute.xlu0 %349
        %vm352 = vcmask 486752
        %353 = vst.msk [vmem:[#allocation2 + $0x30] sm:$0xf] %vm352, %v350
        %354 = vrot.lane.b32.xlu0 %v330, 4
        %v355 = vpop.permute.xlu0 %354
        %vm357 = vcmask 683552
        %358 = vst.msk [vmem:[#allocation2 + $0x30] sm:$0xf] %vm357, %v355
        %359 = vrot.lane.b32.xlu0 %v330, 12
        %v360 = vpop.permute.xlu0 %359
        %vm362 = vcmask 880352
        %363 = vst.msk [vmem:[#allocation2 + $0x30] sm:$0xf] %vm362, %v360
        %364 = vrot.lane.b32.xlu0 %v330, 20
        %v365 = vpop.permute.xlu0 %364
        %vm367 = vcmask 1044384
        %368 = vst.msk [vmem:[#allocation2 + $0x30] sm:$0xf] %vm367, %v365
        %vm369 = vcmask 27648
        %370 = vst.msk [vmem:[#allocation2 + $0x38] sm:$0xf] %vm369, %v365
        %371 = vrot.lane.b32.xlu0 %v330, 28
        %v372 = vpop.permute.xlu0 %371
        %vm374 = vcmask 224352
        %375 = vst.msk [vmem:[#allocation2 + $0x38] sm:$0xf] %vm374, %v372
        %v376 = vcombine.high %v330, %v330
        %377 = vrot.lane.b32.xlu0 %v376, 36
        %v378 = vpop.permute.xlu0 %377
        %vm380 = vcmask 421152
        %381 = vst.msk [vmem:[#allocation2 + $0x38] sm:$0xf] %vm380, %v378
        %382 = vrot.lane.b32.xlu0 %v376, 44
        %v383 = vpop.permute.xlu0 %382
        %vm385 = vcmask 617952
        %386 = vst.msk [vmem:[#allocation2 + $0x38] sm:$0xf] %vm385, %v383
        %387 = vrot.lane.b32.xlu0 %v376, 52
        %v388 = vpop.permute.xlu0 %387
        %vm390 = vcmask 814752
        %391 = vst.msk [vmem:[#allocation2 + $0x38] sm:$0xf] %vm390, %v388
        %392 = vrot.lane.b32.xlu0 %v376, 60
        %v393 = vpop.permute.xlu0 %392
        %vm395 = vcmask 1011552
        %396 = vst.msk [vmem:[#allocation2 + $0x38] sm:$0xf] %vm395, %v393
        %397 = vrot.lane.b32.xlu0 %v376, 68
        %v398 = vpop.permute.xlu0 %397
        %vm400 = vcmask 158752
        %401 = vst.msk [vmem:[#allocation2 + $0x40] sm:$0xf] %vm400, %v398
        %402 = vrot.lane.b32.xlu0 %v376, 76
        %v403 = vpop.permute.xlu0 %402
        %vm405 = vcmask 355552
        %406 = vst.msk [vmem:[#allocation2 + $0x40] sm:$0xf] %vm405, %v403
        %407 = vrot.lane.b32.xlu0 %v376, 84
        %v408 = vpop.permute.xlu0 %407
        %vm410 = vcmask 552352
        %411 = vst.msk [vmem:[#allocation2 + $0x40] sm:$0xf] %vm410, %v408
        %412 = vrot.lane.b32.xlu0 %v376, 92
        %v413 = vpop.permute.xlu0 %412
        %vm415 = vcmask 749152
        %416 = vst.msk [vmem:[#allocation2 + $0x40] sm:$0xf] %vm415, %v413
        %v417 = vld [vmem:[#allocation2 + $0x28] sm:$0xf]
        %v418 = vld [vmem:[#allocation2 + $0x30] sm:$0xf]
        %v419 = vld [vmem:[#allocation2 + $0x38] sm:$0xf]
        %v420 = vld [vmem:[#allocation2 + $0x40] sm:$0xf]
        %v421 = vld [vmem:[#allocation2 + $0x48] sm:$0xf]
        %422 = vrot.lane.b32.xlu0 %v417, 127
        %v423 = vpop.permute.xlu0 %422
        %424 = vrot.lane.b32.xlu0 %v418, 127
        %v425 = vpop.permute.xlu0 %424
        %426 = vrot.lane.b32.xlu0 %v419, 127
        %v427 = vpop.permute.xlu0 %426
        %428 = vrot.lane.b32.xlu0 %v420, 127
        %v429 = vpop.permute.xlu0 %428
        %430 = vrot.lane.b32.xlu0 %v421, 127
        %v431 = vpop.permute.xlu0 %430
        %v432 = vlaneseq
        %v433 = vand.u32 %v432, 127
        %vm434 = vcmp.lt.s32.totalorder %v433, 127
        %v435 = vsel %vm434, %v429, %v431
        %v436 = vsel %vm434, %v427, %v429
        %v437 = vsel %vm434, %v425, %v427
        %v438 = vsel %vm434, %v423, %v425
        %v439 = vsel %vm434, %v431, %v423
        %v440 = vadd.f32 %v417, %v438
        %v441 = vadd.f32 %v418, %v437
        %v442 = vadd.f32 %v419, %v436
        %v443 = vadd.f32 %v420, %v435
        %v444 = vadd.f32 %v421, %v439
        %445 = vrot.lane.b32.xlu0 %v417, 1
        %v446 = vpop.permute.xlu0 %445
        %447 = vrot.lane.b32.xlu0 %v418, 1
        %v448 = vpop.permute.xlu0 %447
        %449 = vrot.lane.b32.xlu0 %v419, 1
        %v450 = vpop.permute.xlu0 %449
        %451 = vrot.lane.b32.xlu0 %v420, 1
        %v452 = vpop.permute.xlu0 %451
        %453 = vrot.lane.b32.xlu0 %v421, 1
        %v454 = vpop.permute.xlu0 %453
        %vm455 = vcmp.lt.s32.totalorder %v433, 1
        %v456 = vsel %vm455, %v452, %v454
        %v457 = vsel %vm455, %v450, %v452
        %v458 = vsel %vm455, %v448, %v450
        %v459 = vsel %vm455, %v446, %v448
        %v460 = vsel %vm455, %v454, %v446
        %v461 = vadd.f32 %v440, %v460
        %v462 = vadd.f32 %v441, %v459
        %v463 = vadd.f32 %v442, %v458
        %v464 = vadd.f32 %v443, %v457
        %v465 = vadd.f32 %v444, %v456
        %466 = vrot.lane.b32.xlu0 %v461, 104
        %v467 = vpop.permute.xlu0 %466
        %468 = vrot.lane.b32.xlu0 %v462, 104
        %v469 = vpop.permute.xlu0 %468
        %470 = vrot.lane.b32.xlu0 %v463, 104
        %v471 = vpop.permute.xlu0 %470
        %472 = vrot.lane.b32.xlu0 %v464, 104
        %v473 = vpop.permute.xlu0 %472
        %474 = vrot.lane.b32.xlu0 %v465, 104
        %v475 = vpop.permute.xlu0 %474
        %vm476 = vcmp.lt.s32.totalorder %v433, 104
        %v477 = vsel %vm476, %v473, %v475
        %v478 = vsel %vm476, %v471, %v473
        %v479 = vsel %vm476, %v469, %v471
        %v480 = vsel %vm476, %v467, %v469
        %v481 = vsel %vm476, %v475, %v467
        %v482 = vadd.f32 %v461, %v480
        %v483 = vadd.f32 %v462, %v479
        %v484 = vadd.f32 %v463, %v478
        %v485 = vadd.f32 %v464, %v477
        %v486 = vadd.f32 %v465, %v481
        %487 = vrot.lane.b32.xlu0 %v461, 24
        %v488 = vpop.permute.xlu0 %487
        %489 = vrot.lane.b32.xlu0 %v462, 24
        %v490 = vpop.permute.xlu0 %489
        %491 = vrot.lane.b32.xlu0 %v463, 24
        %v492 = vpop.permute.xlu0 %491
        %493 = vrot.lane.b32.xlu0 %v464, 24
        %v494 = vpop.permute.xlu0 %493
        %495 = vrot.lane.b32.xlu0 %v465, 24
        %v496 = vpop.permute.xlu0 %495
        %vm497 = vcmp.lt.s32.totalorder %v433, 24
        %v498 = vsel %vm497, %v494, %v496
        %v499 = vsel %vm497, %v492, %v494
        %v500 = vsel %vm497, %v490, %v492
        %v501 = vsel %vm497, %v488, %v490
        %v502 = vsel %vm497, %v496, %v488
        %v503 = vadd.f32 %v482, %v502
        %v504 = vadd.f32 %v483, %v501
        %v505 = vadd.f32 %v484, %v500
        %v506 = vadd.f32 %v485, %v499
        %v507 = vadd.f32 %v486, %v498
        %508 = vrot.lane.b32.xlu0 %v461, 125
        %v509 = vpop.permute.xlu0 %508
        %510 = vrot.lane.b32.xlu0 %v462, 125
        %v511 = vpop.permute.xlu0 %510
        %512 = vrot.lane.b32.xlu0 %v463, 125
        %v513 = vpop.permute.xlu0 %512
        %514 = vrot.lane.b32.xlu0 %v464, 125
        %v515 = vpop.permute.xlu0 %514
        %516 = vrot.lane.b32.xlu0 %v465, 125
        %v517 = vpop.permute.xlu0 %516
        %vm518 = vcmp.lt.s32.totalorder %v433, 125
        %v519 = vsel %vm518, %v515, %v517
        %v520 = vsel %vm518, %v513, %v515
        %v521 = vsel %vm518, %v511, %v513
        %v522 = vsel %vm518, %v509, %v511
        %v523 = vsel %vm518, %v517, %v509
        %v524 = vadd.f32 %v461, %v522
        %v525 = vadd.f32 %v462, %v521
        %v526 = vadd.f32 %v463, %v520
        %v527 = vadd.f32 %v464, %v519
        %v528 = vadd.f32 %v465, %v523
        %529 = vrot.lane.b32.xlu0 %v461, 3
        %v530 = vpop.permute.xlu0 %529
        %531 = vrot.lane.b32.xlu0 %v462, 3
        %v532 = vpop.permute.xlu0 %531
        %533 = vrot.lane.b32.xlu0 %v463, 3
        %v534 = vpop.permute.xlu0 %533
        %535 = vrot.lane.b32.xlu0 %v464, 3
        %v536 = vpop.permute.xlu0 %535
        %537 = vrot.lane.b32.xlu0 %v465, 3
        %v538 = vpop.permute.xlu0 %537
        %vm539 = vcmp.lt.s32.totalorder %v433, 3
        %v540 = vsel %vm539, %v536, %v538
        %v541 = vsel %vm539, %v534, %v536
        %v542 = vsel %vm539, %v532, %v534
        %v543 = vsel %vm539, %v530, %v532
        %v544 = vsel %vm539, %v538, %v530
        %v545 = vadd.f32 %v524, %v544
        %v546 = vadd.f32 %v525, %v543
        %v547 = vadd.f32 %v526, %v542
        %v548 = vadd.f32 %v527, %v541
        %v549 = vadd.f32 %v528, %v540
        %550 = vrot.lane.b32.xlu0 %v545, 104
        %v551 = vpop.permute.xlu0 %550
        %552 = vrot.lane.b32.xlu0 %v546, 104
        %v553 = vpop.permute.xlu0 %552
        %554 = vrot.lane.b32.xlu0 %v547, 104
        %v555 = vpop.permute.xlu0 %554
        %556 = vrot.lane.b32.xlu0 %v548, 104
        %v557 = vpop.permute.xlu0 %556
        %558 = vrot.lane.b32.xlu0 %v549, 104
        %v559 = vpop.permute.xlu0 %558
        %v560 = vsel %vm476, %v557, %v559
        %v561 = vsel %vm476, %v555, %v557
        %v562 = vsel %vm476, %v553, %v555
        %v563 = vsel %vm476, %v551, %v553
        %v564 = vsel %vm476, %v559, %v551
        %v565 = vadd.f32 %v545, %v563
        %v566 = vadd.f32 %v546, %v562
        %v567 = vadd.f32 %v547, %v561
        %v568 = vadd.f32 %v548, %v560
        %v569 = vadd.f32 %v549, %v564
        %570 = vrot.lane.b32.xlu0 %v545, 24
        %v571 = vpop.permute.xlu0 %570
        %572 = vrot.lane.b32.xlu0 %v546, 24
        %v573 = vpop.permute.xlu0 %572
        %574 = vrot.lane.b32.xlu0 %v547, 24
        %v575 = vpop.permute.xlu0 %574
        %576 = vrot.lane.b32.xlu0 %v548, 24
        %v577 = vpop.permute.xlu0 %576
        %578 = vrot.lane.b32.xlu0 %v549, 24
        %v579 = vpop.permute.xlu0 %578
        %v580 = vsel %vm497, %v577, %v579
        %v581 = vsel %vm497, %v575, %v577
        %v582 = vsel %vm497, %v573, %v575
        %v583 = vsel %vm497, %v571, %v573
        %v584 = vsel %vm497, %v579, %v571
        %v585 = vadd.f32 %v565, %v584
        %v586 = vadd.f32 %v566, %v583
        %v587 = vadd.f32 %v567, %v582
        %v588 = vadd.f32 %v568, %v581
        %v589 = vadd.f32 %v569, %v580
        %590 = vrot.lane.b32.xlu0 %v585, 56
        %v591 = vpop.permute.xlu0 %590
        %592 = vrot.lane.b32.xlu0 %v586, 56
        %v593 = vpop.permute.xlu0 %592
        %594 = vrot.lane.b32.xlu0 %v587, 56
        %v595 = vpop.permute.xlu0 %594
        %596 = vrot.lane.b32.xlu0 %v588, 56
        %v597 = vpop.permute.xlu0 %596
        %598 = vrot.lane.b32.xlu0 %v589, 56
        %v599 = vpop.permute.xlu0 %598
        %vm600 = vcmp.lt.s32.totalorder %v433, 56
        %v601 = vsel %vm600, %v597, %v599
        %v602 = vsel %vm600, %v595, %v597
        %v603 = vsel %vm600, %v593, %v595
        %v604 = vsel %vm600, %v591, %v593
        %v605 = vsel %vm600, %v599, %v591
        %v606 = vadd.f32 %v585, %v604
        %v607 = vadd.f32 %v586, %v603
        %v608 = vadd.f32 %v587, %v602
        %v609 = vadd.f32 %v588, %v601
        %v610 = vadd.f32 %v589, %v605
        %611 = vrot.lane.b32.xlu0 %v585, 72
        %v612 = vpop.permute.xlu0 %611
        %613 = vrot.lane.b32.xlu0 %v586, 72
        %v614 = vpop.permute.xlu0 %613
        %615 = vrot.lane.b32.xlu0 %v587, 72
        %v616 = vpop.permute.xlu0 %615
        %617 = vrot.lane.b32.xlu0 %v588, 72
        %v618 = vpop.permute.xlu0 %617
        %619 = vrot.lane.b32.xlu0 %v589, 72
        %v620 = vpop.permute.xlu0 %619
        %vm621 = vcmp.lt.s32.totalorder %v433, 72
        %v622 = vsel %vm621, %v618, %v620
        %v623 = vsel %vm621, %v616, %v618
        %v624 = vsel %vm621, %v614, %v616
        %v625 = vsel %vm621, %v612, %v614
        %v626 = vsel %vm621, %v620, %v612
        %v627 = vadd.f32 %v606, %v626
        %v628 = vadd.f32 %v607, %v625
        %v629 = vadd.f32 %v608, %v624
        %v630 = vadd.f32 %v609, %v623
        %v631 = vadd.f32 %v610, %v622
        %v632 = vmul.f32 %v503, 0.11111111
        %v633 = vmul.f32 %v504, 0.11111111
        %v634 = vmul.f32 %v505, 0.11111111
        %v635 = vmul.f32 %v506, 0.11111111
        %v636 = vmul.f32 %v507, 0.11111111
        %v637 = vsub.f32 %v417, %v632
        %v638 = vsub.f32 %v418, %v633
        %v639 = vsub.f32 %v419, %v634
        %v640 = vsub.f32 %v420, %v635
        %v641 = vsub.f32 %v421, %v636
        %v642 = vmul.f32 %v627, 0.012345679
        %v643 = vmul.f32 %v628, 0.012345679
        %v644 = vmul.f32 %v629, 0.012345679
        %v645 = vmul.f32 %v630, 0.012345679
        %v646 = vmul.f32 %v631, 0.012345679
        %v647 = vsub.f32 %v417, %v642
        %v648 = vsub.f32 %v418, %v643
        %v649 = vsub.f32 %v419, %v644
        %v650 = vsub.f32 %v420, %v645
        %v651 = vsub.f32 %v421, %v646
        %v652 = vadd.f32 %v637, %v647
        %v653 = vadd.f32 %v638, %v648
        %v654 = vadd.f32 %v639, %v649
        %v655 = vadd.f32 %v640, %v650
        %v656 = vadd.f32 %v641, %v651
        %vm657 = vcmask 1043456
        %v658 = vsel %vm657, %v417, 0.0
        %v659 = vsel %vm657, %v418, 0.0
        %v660 = vadd.f32 %v658, %v659
        %v661 = vsel %vm657, %v419, 0.0
        %v662 = vadd.f32 %v660, %v661
        %v663 = vsel %vm657, %v420, 0.0
        %v664 = vadd.f32 %v662, %v663
        %v665 = vsel %vm657, %v421, 0.0
        %v666 = vadd.f32 %v664, %v665
        %667 = vadd.xlane.f32.xlu0 %v666
        %v668 = vpop.xlane.xlu0 %667
        %v669 = vmul.f32 %v668, 0.00390625
        %v670 = vld [vmem:[%s2] sm:$0xf]
        %vm671 = vcmask 31744
        %v673 = vsel %vm671, %v670, 0
        %v676 = vsel %vm657, %v669, 0
        %678 = vmatprep.subr.mxu0 0.0
        %679 = vmatpush1.msra.mxu0 %v676
        %680 = vmatprep.subr.mxu0 0.0
        %681 = vmatpush1.msra.mxu0 0.0
        %682 = vmatprep.subr.mxu0 0.0
        %683 = vmatpush1.msra.mxu0 0.0
        %684 = vmatprep.subr.mxu0 0.0
        %685 = vmatpush1.msra.mxu0 0.0
        %686 = vmatprep.subr.mxu0 0.0
        %687 = vmatpush1.msra.mxu0 0.0
        %688 = vmatprep.subr.mxu0 0.0
        %689 = vmatpush1.msra.mxu0 0.0
        %690 = vmatprep.subr.mxu0 0.0
        %691 = vmatpush1.msra.mxu0 0.0
        %692 = vmatprep.subr.mxu0 0.0
        %693 = vmatpush1.msra.mxu0 0.0
        %694 = vmatprep.subr.mxu0 0.0
        %695 = vmatpush1.msra.mxu0 0.0
        %696 = vmatprep.subr.mxu0 0.0
        %697 = vmatpush1.msra.mxu0 0.0
        %698 = vmatprep.subr.mxu0 0.0
        %699 = vmatpush1.msra.mxu0 0.0
        %700 = vmatprep.subr.mxu0 0.0
        %701 = vmatpush1.msra.mxu0 0.0
        %702 = vmatprep.subr.mxu0 0.0
        %703 = vmatpush1.msra.mxu0 0.0
        %704 = vmatprep.subr.mxu0 0.0
        %705 = vmatpush1.msra.mxu0 0.0
        %706 = vmatprep.subr.mxu0 0.0
        %707 = vmatpush1.msra.mxu0 0.0
        %708 = vmatprep.subr.mxu0 0.0
        %709 = vmatpush1.msra.mxu0 0.0
        %710 = vmatprep.subr.mxu0 0.0
        %711 = vmatpush1.msra.mxu0 0.0
        %712 = vmatprep.subr.mxu0 0.0
        %713 = vmatpush1.msra.mxu0 0.0
        %714 = vmatprep.subr.mxu0 0.0
        %715 = vmatpush1.msra.mxu0 0.0
        %716 = vmatprep.subr.mxu0 0.0
        %717 = vmatpush1.msra.mxu0 0.0
        %718 = vmatprep.subr.mxu0 0.0
        %719 = vmatpush1.msra.mxu0 0.0
        %720 = vmatprep.subr.mxu0 0.0
        %721 = vmatpush1.msra.mxu0 0.0
        %722 = vmatprep.subr.mxu0 0.0
        %723 = vmatpush1.msra.mxu0 0.0
        %724 = vmatprep.subr.mxu0 0.0
        %725 = vmatpush1.msra.mxu0 0.0
        %726 = vmatprep.subr.mxu0 0.0
        %727 = vmatpush1.msra.mxu0 0.0
        %728 = vmatprep.subr.mxu0 0.0
        %729 = vmatpush1.msra.mxu0 0.0
        %730 = vmatprep.subr.mxu0 0.0
        %731 = vmatpush1.msra.mxu0 0.0
        %732 = vmatprep.subr.mxu0 0.0
        %733 = vmatpush1.msra.mxu0 0.0
        %734 = vmatprep.subr.mxu0 0.0
        %735 = vmatpush1.msra.mxu0 0.0
        %736 = vmatprep.subr.mxu0 0.0
        %737 = vmatpush1.msra.mxu0 0.0
        %738 = vmatprep.subr.mxu0 0.0
        %739 = vmatpush1.msra.mxu0 0.0
        %740 = vmatprep.subr.mxu0 0.0
        %741 = vmatpush1.msra.mxu0 0.0
        %742 = vmatprep.mubr.f32.mxu0 0.0
        %743 = vmatmul.mubr.f32.gmra.mrb[0].mxu0 %v673
        %v744 = vpop.f32.mrb[0].mxu0
        %v745 = vadd.f32 0.0, %v744
        %v746 = vpop.f32.mrb[0].mxu0
        %747 = vdwg.mxu0
        %v748 = vld [vmem:[%s3] sm:$0xf]
        %v749 = vadd.f32 %v745, %v748
        %v750 = vxor.u32 %v749, 2147483648
        %v751 = vmul.f32 %v750, 1.442695
        %v752 = vpow.pop %v751
        %v753 = vadd.f32 %v752, 1.0
        %v754 = vrcp.pop %v753
        %v755 = vmul.f32 1.0, %v754
        %757 = vset.pattern.permute.xlu0 0
        %758 = vperm.xlu0 %757, %v755
        %v759 = vpop.permute.xlu0 %758
        %v761 = vmul.f32 %v417, %v759
        %v762 = vmul.f32 %v418, %v759
        %v763 = vmul.f32 %v419, %v759
        %v764 = vmul.f32 %v420, %v759
        %v765 = vmul.f32 %v421, %v759
        %766 = vst [vmem:[#allocation2] sm:$0xf] %v652
        %767 = vst [vmem:[#allocation2 + $0x8] sm:$0xf] %v653
        %768 = vst [vmem:[#allocation2 + $0x10] sm:$0xf] %v654
        %769 = vst [vmem:[#allocation2 + $0x18] sm:$0xf] %v655
        %770 = vst [vmem:[#allocation2 + $0x20] sm:$0xf] %v656
        %771 = vst [vmem:[#allocation2 + $0x50] sm:$0xf] %v761
        %772 = vst [vmem:[#allocation2 + $0x58] sm:$0xf] %v762
        %773 = vst [vmem:[#allocation2 + $0x60] sm:$0xf] %v763
        %774 = vst [vmem:[#allocation2 + $0x68] sm:$0xf] %v764
        %775 = vst [vmem:[#allocation2 + $0x70] sm:$0xf] %v765
        %v776 = vlaneseq
        %vm777 = vcmp.ge.s32.totalorder %v776, 0
        %vm778 = vcmp.lt.s32.totalorder %v776, 640
        %vm779 = vmand %vm777, %vm778
        %s780 = scalar_lea.vmem [#allocation2], 120
        %781 = vst.msk [vmem:[%s780] ss:$8 sm:$0xf] %vm779, 1.0
        %782 = vst.msk [vmem:[%s780] ss:$8 sm:$0x10] %vm779, 1.0
        %v783 = vld [vmem:[%s1] sm:$0xff]
        %v784 = vld [vmem:[#allocation2] sm:$0xff]
        %v785 = vld [vmem:[#allocation2 + $0x8] sm:$0xff]
        %v786 = vld [vmem:[#allocation2 + $0x10] sm:$0xff]
        %v787 = vld [vmem:[#allocation2 + $0x18] sm:$0xff]
        %v788 = vld [vmem:[#allocation2 + $0x20] sm:$0xff]
        %v789 = vld [vmem:[#allocation2 + $0x28] sm:$0xff]
        %v790 = vld [vmem:[#allocation2 + $0x30] sm:$0xff]
        %v791 = vld [vmem:[#allocation2 + $0x38] sm:$0xff]
        %v792 = vld [vmem:[#allocation2 + $0x40] sm:$0xff]
        %v793 = vld [vmem:[#allocation2 + $0x48] sm:$0xff]
        %v794 = vld [vmem:[#allocation2 + $0x50] sm:$0xff]
        %v795 = vld [vmem:[#allocation2 + $0x58] sm:$0xff]
        %v796 = vld [vmem:[#allocation2 + $0x60] sm:$0xff]
        %v797 = vld [vmem:[#allocation2 + $0x68] sm:$0xff]
        %v798 = vld [vmem:[#allocation2 + $0x70] sm:$0xff]
        %v799 = vld [vmem:[#allocation2 + $0x78] sm:$0x1]
        %v800 = vld [vmem:[#allocation2 + $0x80] sm:$0x1]
        %v801 = vld [vmem:[#allocation2 + $0x88] sm:$0x1]
        %v802 = vld [vmem:[#allocation2 + $0x90] sm:$0x1]
        %v803 = vld [vmem:[#allocation2 + $0x98] sm:$0x1]
        %vm804 = vcmask 203776
        %v806 = vsel %vm804, %v783, 0
        %vm808 = vcmask 1040384
        %v810 = vsel %vm808, %v799, 0
        %v813 = vsel %vm808, %v800, 0
        %v816 = vsel %vm808, %v801, 0
        %v819 = vsel %vm808, %v802, 0
        %v822 = vsel %vm808, %v803, 0
        %824 = vmatprep.subr.mxu0 %v785
        %825 = vmatpush1.msra.mxu0 %v784
        %826 = vmatprep.subr.mxu0 %v790
        %827 = vmatpush1.msra.mxu0 %v789
        %828 = vmatprep.subr.mxu0 %v795
        %829 = vmatpush1.msra.mxu0 %v794
        %830 = vmatprep.subr.mxu0 %v813
        %831 = vmatpush1.msra.mxu0 %v810
        %832 = vmatprep.subr.mxu0 0.0
        %833 = vmatpush1.msra.mxu0 0.0
        %834 = vmatprep.subr.mxu0 0.0
        %835 = vmatpush1.msra.mxu0 0.0
        %836 = vmatprep.subr.mxu0 0.0
        %837 = vmatpush1.msra.mxu0 0.0
        %838 = vmatprep.subr.mxu0 0.0
        %839 = vmatpush1.msra.mxu0 0.0
        %840 = vmatprep.subr.mxu0 0.0
        %841 = vmatpush1.msra.mxu0 0.0
        %842 = vmatprep.subr.mxu0 0.0
        %843 = vmatpush1.msra.mxu0 0.0
        %844 = vmatprep.subr.mxu0 0.0
        %845 = vmatpush1.msra.mxu0 0.0
        %846 = vmatprep.subr.mxu0 0.0
        %847 = vmatpush1.msra.mxu0 0.0
        %848 = vmatprep.subr.mxu0 0.0
        %849 = vmatpush1.msra.mxu0 0.0
        %850 = vmatprep.subr.mxu0 0.0
        %851 = vmatpush1.msra.mxu0 0.0
        %852 = vmatprep.subr.mxu0 0.0
        %853 = vmatpush1.msra.mxu0 0.0
        %854 = vmatprep.subr.mxu0 0.0
        %855 = vmatpush1.msra.mxu0 0.0
        %856 = vmatprep.subr.mxu0 0.0
        %857 = vmatpush1.msra.mxu0 0.0
        %858 = vmatprep.subr.mxu0 0.0
        %859 = vmatpush1.msra.mxu0 0.0
        %860 = vmatprep.subr.mxu0 0.0
        %861 = vmatpush1.msra.mxu0 0.0
        %862 = vmatprep.subr.mxu0 0.0
        %863 = vmatpush1.msra.mxu0 0.0
        %864 = vmatprep.subr.mxu0 0.0
        %865 = vmatpush1.msra.mxu0 0.0
        %866 = vmatprep.subr.mxu0 0.0
        %867 = vmatpush1.msra.mxu0 0.0
        %868 = vmatprep.subr.mxu0 0.0
        %869 = vmatpush1.msra.mxu0 0.0
        %870 = vmatprep.subr.mxu0 0.0
        %871 = vmatpush1.msra.mxu0 0.0
        %872 = vmatprep.subr.mxu0 0.0
        %873 = vmatpush1.msra.mxu0 0.0
        %874 = vmatprep.subr.mxu0 0.0
        %875 = vmatpush1.msra.mxu0 0.0
        %876 = vmatprep.subr.mxu0 0.0
        %877 = vmatpush1.msra.mxu0 0.0
        %878 = vmatprep.subr.mxu0 0.0
        %879 = vmatpush1.msra.mxu0 0.0
        %880 = vmatprep.subr.mxu0 0.0
        %881 = vmatpush1.msra.mxu0 0.0
        %882 = vmatprep.subr.mxu0 0.0
        %883 = vmatpush1.msra.mxu0 0.0
        %884 = vmatprep.subr.mxu0 0.0
        %885 = vmatpush1.msra.mxu0 0.0
        %886 = vmatprep.subr.mxu0 0.0
        %887 = vmatpush1.msra.mxu0 0.0
        %888 = vmatprep.mubr.f32.mxu0 0.0
        %889 = vmatmul.mubr.f32.gmra.mrb[0].mxu0 %v806
        %v890 = vpop.f32.mrb[0].mxu0
        %v891 = vadd.f32 0.0, %v890
        %v892 = vpop.f32.mrb[0].mxu0
        %v893 = vadd.f32 0.0, %v892
        %894 = vdwg.mxu0
        %895 = vmatprep.subr.mxu0 %v787
        %896 = vmatpush1.msra.mxu0 %v786
        %897 = vmatprep.subr.mxu0 %v792
        %898 = vmatpush1.msra.mxu0 %v791
        %899 = vmatprep.subr.mxu0 %v797
        %900 = vmatpush1.msra.mxu0 %v796
        %901 = vmatprep.subr.mxu0 %v819
        %902 = vmatpush1.msra.mxu0 %v816
        %903 = vmatprep.subr.mxu0 0.0
        %904 = vmatpush1.msra.mxu0 0.0
        %905 = vmatprep.subr.mxu0 0.0
        %906 = vmatpush1.msra.mxu0 0.0
        %907 = vmatprep.subr.mxu0 0.0
        %908 = vmatpush1.msra.mxu0 0.0
        %909 = vmatprep.subr.mxu0 0.0
        %910 = vmatpush1.msra.mxu0 0.0
        %911 = vmatprep.subr.mxu0 0.0
        %912 = vmatpush1.msra.mxu0 0.0
        %913 = vmatprep.subr.mxu0 0.0
        %914 = vmatpush1.msra.mxu0 0.0
        %915 = vmatprep.subr.mxu0 0.0
        %916 = vmatpush1.msra.mxu0 0.0
        %917 = vmatprep.subr.mxu0 0.0
        %918 = vmatpush1.msra.mxu0 0.0
        %919 = vmatprep.subr.mxu0 0.0
        %920 = vmatpush1.msra.mxu0 0.0
        %921 = vmatprep.subr.mxu0 0.0
        %922 = vmatpush1.msra.mxu0 0.0
        %923 = vmatprep.subr.mxu0 0.0
        %924 = vmatpush1.msra.mxu0 0.0
        %925 = vmatprep.subr.mxu0 0.0
        %926 = vmatpush1.msra.mxu0 0.0
        %927 = vmatprep.subr.mxu0 0.0
        %928 = vmatpush1.msra.mxu0 0.0
        %929 = vmatprep.subr.mxu0 0.0
        %930 = vmatpush1.msra.mxu0 0.0
        %931 = vmatprep.subr.mxu0 0.0
        %932 = vmatpush1.msra.mxu0 0.0
        %933 = vmatprep.subr.mxu0 0.0
        %934 = vmatpush1.msra.mxu0 0.0
        %935 = vmatprep.subr.mxu0 0.0
        %936 = vmatpush1.msra.mxu0 0.0
        %937 = vmatprep.subr.mxu0 0.0
        %938 = vmatpush1.msra.mxu0 0.0
        %939 = vmatprep.subr.mxu0 0.0
        %940 = vmatpush1.msra.mxu0 0.0
        %941 = vmatprep.subr.mxu0 0.0
        %942 = vmatpush1.msra.mxu0 0.0
        %943 = vmatprep.subr.mxu0 0.0
        %944 = vmatpush1.msra.mxu0 0.0
        %945 = vmatprep.subr.mxu0 0.0
        %946 = vmatpush1.msra.mxu0 0.0
        %947 = vmatprep.subr.mxu0 0.0
        %948 = vmatpush1.msra.mxu0 0.0
        %949 = vmatprep.subr.mxu0 0.0
        %950 = vmatpush1.msra.mxu0 0.0
        %951 = vmatprep.subr.mxu0 0.0
        %952 = vmatpush1.msra.mxu0 0.0
        %953 = vmatprep.subr.mxu0 0.0
        %954 = vmatpush1.msra.mxu0 0.0
        %955 = vmatprep.subr.mxu0 0.0
        %956 = vmatpush1.msra.mxu0 0.0
        %957 = vmatprep.subr.mxu0 0.0
        %958 = vmatpush1.msra.mxu0 0.0
        %959 = vmatprep.mubr.f32.mxu0 0.0
        %960 = vmatmul.mubr.f32.gmra.mrb[0].mxu0 %v806
        %v961 = vpop.f32.mrb[0].mxu0
        %v962 = vadd.f32 0.0, %v961
        %v963 = vpop.f32.mrb[0].mxu0
        %v964 = vadd.f32 0.0, %v963
        %965 = vdwg.mxu0
        %966 = vmatprep.subr.mxu0 0.0
        %967 = vmatpush1.msra.mxu0 %v788
        %968 = vmatprep.subr.mxu0 0.0
        %969 = vmatpush1.msra.mxu0 %v793
        %970 = vmatprep.subr.mxu0 0.0
        %971 = vmatpush1.msra.mxu0 %v798
        %972 = vmatprep.subr.mxu0 0.0
        %973 = vmatpush1.msra.mxu0 %v822
        %974 = vmatprep.subr.mxu0 0.0
        %975 = vmatpush1.msra.mxu0 0.0
        %976 = vmatprep.subr.mxu0 0.0
        %977 = vmatpush1.msra.mxu0 0.0
        %978 = vmatprep.subr.mxu0 0.0
        %979 = vmatpush1.msra.mxu0 0.0
        %980 = vmatprep.subr.mxu0 0.0
        %981 = vmatpush1.msra.mxu0 0.0
        %982 = vmatprep.subr.mxu0 0.0
        %983 = vmatpush1.msra.mxu0 0.0
        %984 = vmatprep.subr.mxu0 0.0
        %985 = vmatpush1.msra.mxu0 0.0
        %986 = vmatprep.subr.mxu0 0.0
        %987 = vmatpush1.msra.mxu0 0.0
        %988 = vmatprep.subr.mxu0 0.0
        %989 = vmatpush1.msra.mxu0 0.0
        %990 = vmatprep.subr.mxu0 0.0
        %991 = vmatpush1.msra.mxu0 0.0
        %992 = vmatprep.subr.mxu0 0.0
        %993 = vmatpush1.msra.mxu0 0.0
        %994 = vmatprep.subr.mxu0 0.0
        %995 = vmatpush1.msra.mxu0 0.0
        %996 = vmatprep.subr.mxu0 0.0
        %997 = vmatpush1.msra.mxu0 0.0
        %998 = vmatprep.subr.mxu0 0.0
        %999 = vmatpush1.msra.mxu0 0.0
        %1000 = vmatprep.subr.mxu0 0.0
        %1001 = vmatpush1.msra.mxu0 0.0
        %1002 = vmatprep.subr.mxu0 0.0
        %1003 = vmatpush1.msra.mxu0 0.0
        %1004 = vmatprep.subr.mxu0 0.0
        %1005 = vmatpush1.msra.mxu0 0.0
        %1006 = vmatprep.subr.mxu0 0.0
        %1007 = vmatpush1.msra.mxu0 0.0
        %1008 = vmatprep.subr.mxu0 0.0
        %1009 = vmatpush1.msra.mxu0 0.0
        %1010 = vmatprep.subr.mxu0 0.0
        %1011 = vmatpush1.msra.mxu0 0.0
        %1012 = vmatprep.subr.mxu0 0.0
        %1013 = vmatpush1.msra.mxu0 0.0
        %1014 = vmatprep.subr.mxu0 0.0
        %1015 = vmatpush1.msra.mxu0 0.0
        %1016 = vmatprep.subr.mxu0 0.0
        %1017 = vmatpush1.msra.mxu0 0.0
        %1018 = vmatprep.subr.mxu0 0.0
        %1019 = vmatpush1.msra.mxu0 0.0
        %1020 = vmatprep.subr.mxu0 0.0
        %1021 = vmatpush1.msra.mxu0 0.0
        %1022 = vmatprep.subr.mxu0 0.0
        %1023 = vmatpush1.msra.mxu0 0.0
        %1024 = vmatprep.subr.mxu0 0.0
        %1025 = vmatpush1.msra.mxu0 0.0
        %1026 = vmatprep.subr.mxu0 0.0
        %1027 = vmatpush1.msra.mxu0 0.0
        %1028 = vmatprep.subr.mxu0 0.0
        %1029 = vmatpush1.msra.mxu0 0.0
        %1030 = vmatprep.mubr.f32.mxu0 0.0
        %1031 = vmatmul.mubr.f32.gmra.mrb[0].mxu0 %v806
        %v1032 = vpop.f32.mrb[0].mxu0
        %v1033 = vadd.f32 0.0, %v1032
        %v1034 = vpop.f32.mrb[0].mxu0
        %1035 = vdwg.mxu0
        %v1036 = vmul.f32 %v891, %v891
        %v1037 = vmul.f32 %v893, %v893
        %v1038 = vmul.f32 %v962, %v962
        %v1039 = vmul.f32 %v964, %v964
        %v1040 = vmul.f32 %v1033, %v1033
        %v1041 = vmul.f32 %v891, %v1036
        %v1042 = vmul.f32 %v893, %v1037
        %v1043 = vmul.f32 %v962, %v1038
        %v1044 = vmul.f32 %v964, %v1039
        %v1045 = vmul.f32 %v1033, %v1040
        %v1046 = vmul.f32 %v1041, 0.044715
        %v1047 = vmul.f32 %v1042, 0.044715
        %v1048 = vmul.f32 %v1043, 0.044715
        %v1049 = vmul.f32 %v1044, 0.044715
        %v1050 = vmul.f32 %v1045, 0.044715
        %v1051 = vadd.f32 %v891, %v1046
        %v1052 = vadd.f32 %v893, %v1047
        %v1053 = vadd.f32 %v962, %v1048
        %v1054 = vadd.f32 %v964, %v1049
        %v1055 = vadd.f32 %v1033, %v1050
        %v1056 = vmul.f32 %v1051, 0.7978846
        %v1057 = vmul.f32 %v1052, 0.7978846
        %v1058 = vmul.f32 %v1053, 0.7978846
        %v1059 = vmul.f32 %v1054, 0.7978846
        %v1060 = vmul.f32 %v1055, 0.7978846
        %v1061 = vtanh.pop %v1056
        %v1062 = vtanh.pop %v1057
        %v1063 = vtanh.pop %v1058
        %v1064 = vtanh.pop %v1059
        %v1065 = vtanh.pop %v1060
        %v1066 = vadd.f32 %v1061, 1.0
        %v1067 = vadd.f32 %v1062, 1.0
        %v1068 = vadd.f32 %v1063, 1.0
        %v1069 = vadd.f32 %v1064, 1.0
        %v1070 = vadd.f32 %v1065, 1.0
        %v1071 = vmul.f32 %v1066, 0.5
        %v1072 = vmul.f32 %v1067, 0.5
        %v1073 = vmul.f32 %v1068, 0.5
        %v1074 = vmul.f32 %v1069, 0.5
        %v1075 = vmul.f32 %v1070, 0.5
        %v1076 = vmul.f32 %v891, %v1071
        %v1077 = vmul.f32 %v893, %v1072
        %v1078 = vmul.f32 %v962, %v1073
        %v1079 = vmul.f32 %v964, %v1074
        %v1080 = vmul.f32 %v1033, %v1075
        %v1081 = vld [vmem:[%s4] sm:$0xff]
        %vm1082 = vcmask 64512
        %v1084 = vsel %vm1082, %v1081, 0
        %1086 = vmatprep.subr.mxu0 %v1077
        %1087 = vmatpush1.msra.mxu0 %v1076
        %1088 = vmatprep.subr.mxu0 0.0
        %1089 = vmatpush1.msra.mxu0 0.0
        %1090 = vmatprep.subr.mxu0 0.0
        %1091 = vmatpush1.msra.mxu0 0.0
        %1092 = vmatprep.subr.mxu0 0.0
        %1093 = vmatpush1.msra.mxu0 0.0
        %1094 = vmatprep.subr.mxu0 0.0
        %1095 = vmatpush1.msra.mxu0 0.0
        %1096 = vmatprep.subr.mxu0 0.0
        %1097 = vmatpush1.msra.mxu0 0.0
        %1098 = vmatprep.subr.mxu0 0.0
        %1099 = vmatpush1.msra.mxu0 0.0
        %1100 = vmatprep.subr.mxu0 0.0
        %1101 = vmatpush1.msra.mxu0 0.0
        %1102 = vmatprep.subr.mxu0 0.0
        %1103 = vmatpush1.msra.mxu0 0.0
        %1104 = vmatprep.subr.mxu0 0.0
        %1105 = vmatpush1.msra.mxu0 0.0
        %1106 = vmatprep.subr.mxu0 0.0
        %1107 = vmatpush1.msra.mxu0 0.0
        %1108 = vmatprep.subr.mxu0 0.0
        %1109 = vmatpush1.msra.mxu0 0.0
        %1110 = vmatprep.subr.mxu0 0.0
        %1111 = vmatpush1.msra.mxu0 0.0
        %1112 = vmatprep.subr.mxu0 0.0
        %1113 = vmatpush1.msra.mxu0 0.0
        %1114 = vmatprep.subr.mxu0 0.0
        %1115 = vmatpush1.msra.mxu0 0.0
        %1116 = vmatprep.subr.mxu0 0.0
        %1117 = vmatpush1.msra.mxu0 0.0
        %1118 = vmatprep.subr.mxu0 0.0
        %1119 = vmatpush1.msra.mxu0 0.0
        %1120 = vmatprep.subr.mxu0 0.0
        %1121 = vmatpush1.msra.mxu0 0.0
        %1122 = vmatprep.subr.mxu0 0.0
        %1123 = vmatpush1.msra.mxu0 0.0
        %1124 = vmatprep.subr.mxu0 0.0
        %1125 = vmatpush1.msra.mxu0 0.0
        %1126 = vmatprep.subr.mxu0 0.0
        %1127 = vmatpush1.msra.mxu0 0.0
        %1128 = vmatprep.subr.mxu0 0.0
        %1129 = vmatpush1.msra.mxu0 0.0
        %1130 = vmatprep.subr.mxu0 0.0
        %1131 = vmatpush1.msra.mxu0 0.0
        %1132 = vmatprep.subr.mxu0 0.0
        %1133 = vmatpush1.msra.mxu0 0.0
        %1134 = vmatprep.subr.mxu0 0.0
        %1135 = vmatpush1.msra.mxu0 0.0
        %1136 = vmatprep.subr.mxu0 0.0
        %1137 = vmatpush1.msra.mxu0 0.0
        %1138 = vmatprep.subr.mxu0 0.0
        %1139 = vmatpush1.msra.mxu0 0.0
        %1140 = vmatprep.subr.mxu0 0.0
        %1141 = vmatpush1.msra.mxu0 0.0
        %1142 = vmatprep.subr.mxu0 0.0
        %1143 = vmatpush1.msra.mxu0 0.0
        %1144 = vmatprep.subr.mxu0 0.0
        %1145 = vmatpush1.msra.mxu0 0.0
        %1146 = vmatprep.subr.mxu0 0.0
        %1147 = vmatpush1.msra.mxu0 0.0
        %1148 = vmatprep.subr.mxu0 0.0
        %1149 = vmatpush1.msra.mxu0 0.0
        %1150 = vmatprep.mubr.f32.mxu0 0.0
        %1151 = vmatmul.mubr.f32.gmra.mrb[0].mxu0 %v1084
        %v1152 = vpop.f32.mrb[0].mxu0
        %v1153 = vadd.f32 0.0, %v1152
        %v1154 = vpop.f32.mrb[0].mxu0
        %v1155 = vadd.f32 0.0, %v1154
        %1156 = vdwg.mxu0
        %1157 = vmatprep.subr.mxu0 %v1079
        %1158 = vmatpush1.msra.mxu0 %v1078
        %1159 = vmatprep.subr.mxu0 0.0
        %1160 = vmatpush1.msra.mxu0 0.0
        %1161 = vmatprep.subr.mxu0 0.0
        %1162 = vmatpush1.msra.mxu0 0.0
        %1163 = vmatprep.subr.mxu0 0.0
        %1164 = vmatpush1.msra.mxu0 0.0
        %1165 = vmatprep.subr.mxu0 0.0
        %1166 = vmatpush1.msra.mxu0 0.0
        %1167 = vmatprep.subr.mxu0 0.0
        %1168 = vmatpush1.msra.mxu0 0.0
        %1169 = vmatprep.subr.mxu0 0.0
        %1170 = vmatpush1.msra.mxu0 0.0
        %1171 = vmatprep.subr.mxu0 0.0
        %1172 = vmatpush1.msra.mxu0 0.0
        %1173 = vmatprep.subr.mxu0 0.0
        %1174 = vmatpush1.msra.mxu0 0.0
        %1175 = vmatprep.subr.mxu0 0.0
        %1176 = vmatpush1.msra.mxu0 0.0
        %1177 = vmatprep.subr.mxu0 0.0
        %1178 = vmatpush1.msra.mxu0 0.0
        %1179 = vmatprep.subr.mxu0 0.0
        %1180 = vmatpush1.msra.mxu0 0.0
        %1181 = vmatprep.subr.mxu0 0.0
        %1182 = vmatpush1.msra.mxu0 0.0
        %1183 = vmatprep.subr.mxu0 0.0
        %1184 = vmatpush1.msra.mxu0 0.0
        %1185 = vmatprep.subr.mxu0 0.0
        %1186 = vmatpush1.msra.mxu0 0.0
        %1187 = vmatprep.subr.mxu0 0.0
        %1188 = vmatpush1.msra.mxu0 0.0
        %1189 = vmatprep.subr.mxu0 0.0
        %1190 = vmatpush1.msra.mxu0 0.0
        %1191 = vmatprep.subr.mxu0 0.0
        %1192 = vmatpush1.msra.mxu0 0.0
        %1193 = vmatprep.subr.mxu0 0.0
        %1194 = vmatpush1.msra.mxu0 0.0
        %1195 = vmatprep.subr.mxu0 0.0
        %1196 = vmatpush1.msra.mxu0 0.0
        %1197 = vmatprep.subr.mxu0 0.0
        %1198 = vmatpush1.msra.mxu0 0.0
        %1199 = vmatprep.subr.mxu0 0.0
        %1200 = vmatpush1.msra.mxu0 0.0
        %1201 = vmatprep.subr.mxu0 0.0
        %1202 = vmatpush1.msra.mxu0 0.0
        %1203 = vmatprep.subr.mxu0 0.0
        %1204 = vmatpush1.msra.mxu0 0.0
        %1205 = vmatprep.subr.mxu0 0.0
        %1206 = vmatpush1.msra.mxu0 0.0
        %1207 = vmatprep.subr.mxu0 0.0
        %1208 = vmatpush1.msra.mxu0 0.0
        %1209 = vmatprep.subr.mxu0 0.0
        %1210 = vmatpush1.msra.mxu0 0.0
        %1211 = vmatprep.subr.mxu0 0.0
        %1212 = vmatpush1.msra.mxu0 0.0
        %1213 = vmatprep.subr.mxu0 0.0
        %1214 = vmatpush1.msra.mxu0 0.0
        %1215 = vmatprep.subr.mxu0 0.0
        %1216 = vmatpush1.msra.mxu0 0.0
        %1217 = vmatprep.subr.mxu0 0.0
        %1218 = vmatpush1.msra.mxu0 0.0
        %1219 = vmatprep.subr.mxu0 0.0
        %1220 = vmatpush1.msra.mxu0 0.0
        %1221 = vmatprep.mubr.f32.mxu0 0.0
        %1222 = vmatmul.mubr.f32.gmra.mrb[0].mxu0 %v1084
        %v1223 = vpop.f32.mrb[0].mxu0
        %v1224 = vadd.f32 0.0, %v1223
        %v1225 = vpop.f32.mrb[0].mxu0
        %v1226 = vadd.f32 0.0, %v1225
        %1227 = vdwg.mxu0
        %1228 = vmatprep.subr.mxu0 0.0
        %1229 = vmatpush1.msra.mxu0 %v1080
        %1230 = vmatprep.subr.mxu0 0.0
        %1231 = vmatpush1.msra.mxu0 0.0
        %1232 = vmatprep.subr.mxu0 0.0
        %1233 = vmatpush1.msra.mxu0 0.0
        %1234 = vmatprep.subr.mxu0 0.0
        %1235 = vmatpush1.msra.mxu0 0.0
        %1236 = vmatprep.subr.mxu0 0.0
        %1237 = vmatpush1.msra.mxu0 0.0
        %1238 = vmatprep.subr.mxu0 0.0
        %1239 = vmatpush1.msra.mxu0 0.0
        %1240 = vmatprep.subr.mxu0 0.0
        %1241 = vmatpush1.msra.mxu0 0.0
        %1242 = vmatprep.subr.mxu0 0.0
        %1243 = vmatpush1.msra.mxu0 0.0
        %1244 = vmatprep.subr.mxu0 0.0
        %1245 = vmatpush1.msra.mxu0 0.0
        %1246 = vmatprep.subr.mxu0 0.0
        %1247 = vmatpush1.msra.mxu0 0.0
        %1248 = vmatprep.subr.mxu0 0.0
        %1249 = vmatpush1.msra.mxu0 0.0
        %1250 = vmatprep.subr.mxu0 0.0
        %1251 = vmatpush1.msra.mxu0 0.0
        %1252 = vmatprep.subr.mxu0 0.0
        %1253 = vmatpush1.msra.mxu0 0.0
        %1254 = vmatprep.subr.mxu0 0.0
        %1255 = vmatpush1.msra.mxu0 0.0
        %1256 = vmatprep.subr.mxu0 0.0
        %1257 = vmatpush1.msra.mxu0 0.0
        %1258 = vmatprep.subr.mxu0 0.0
        %1259 = vmatpush1.msra.mxu0 0.0
        %1260 = vmatprep.subr.mxu0 0.0
        %1261 = vmatpush1.msra.mxu0 0.0
        %1262 = vmatprep.subr.mxu0 0.0
        %1263 = vmatpush1.msra.mxu0 0.0
        %1264 = vmatprep.subr.mxu0 0.0
        %1265 = vmatpush1.msra.mxu0 0.0
        %1266 = vmatprep.subr.mxu0 0.0
        %1267 = vmatpush1.msra.mxu0 0.0
        %1268 = vmatprep.subr.mxu0 0.0
        %1269 = vmatpush1.msra.mxu0 0.0
        %1270 = vmatprep.subr.mxu0 0.0
        %1271 = vmatpush1.msra.mxu0 0.0
        %1272 = vmatprep.subr.mxu0 0.0
        %1273 = vmatpush1.msra.mxu0 0.0
        %1274 = vmatprep.subr.mxu0 0.0
        %1275 = vmatpush1.msra.mxu0 0.0
        %1276 = vmatprep.subr.mxu0 0.0
        %1277 = vmatpush1.msra.mxu0 0.0
        %1278 = vmatprep.subr.mxu0 0.0
        %1279 = vmatpush1.msra.mxu0 0.0
        %1280 = vmatprep.subr.mxu0 0.0
        %1281 = vmatpush1.msra.mxu0 0.0
        %1282 = vmatprep.subr.mxu0 0.0
        %1283 = vmatpush1.msra.mxu0 0.0
        %1284 = vmatprep.subr.mxu0 0.0
        %1285 = vmatpush1.msra.mxu0 0.0
        %1286 = vmatprep.subr.mxu0 0.0
        %1287 = vmatpush1.msra.mxu0 0.0
        %1288 = vmatprep.subr.mxu0 0.0
        %1289 = vmatpush1.msra.mxu0 0.0
        %1290 = vmatprep.subr.mxu0 0.0
        %1291 = vmatpush1.msra.mxu0 0.0
        %1292 = vmatprep.mubr.f32.mxu0 0.0
        %1293 = vmatmul.mubr.f32.gmra.mrb[0].mxu0 %v1084
        %v1294 = vpop.f32.mrb[0].mxu0
        %v1295 = vadd.f32 0.0, %v1294
        %v1296 = vpop.f32.mrb[0].mxu0
        %1297 = vdwg.mxu0
        %1298 = vrot.lane.b32.xlu0 %v1153, 127
        %v1299 = vpop.permute.xlu0 %1298
        %1300 = vrot.lane.b32.xlu0 %v1155, 127
        %v1301 = vpop.permute.xlu0 %1300
        %1302 = vrot.lane.b32.xlu0 %v1224, 127
        %v1303 = vpop.permute.xlu0 %1302
        %1304 = vrot.lane.b32.xlu0 %v1226, 127
        %v1305 = vpop.permute.xlu0 %1304
        %1306 = vrot.lane.b32.xlu0 %v1295, 127
        %v1307 = vpop.permute.xlu0 %1306
        %v1308 = vsel %vm434, %v1305, %v1307
        %v1309 = vsel %vm434, %v1303, %v1305
        %v1310 = vsel %vm434, %v1301, %v1303
        %v1311 = vsel %vm434, %v1299, %v1301
        %v1312 = vsel %vm434, %v1307, %v1299
        %v1313 = vmax.f32 %v1153, %v1311
        %v1314 = vmax.f32 %v1155, %v1310
        %v1315 = vmax.f32 %v1224, %v1309
        %v1316 = vmax.f32 %v1226, %v1308
        %v1317 = vmax.f32 %v1295, %v1312
        %1318 = vrot.lane.b32.xlu0 %v1313, 104
        %v1319 = vpop.permute.xlu0 %1318
        %1320 = vrot.lane.b32.xlu0 %v1314, 104
        %v1321 = vpop.permute.xlu0 %1320
        %1322 = vrot.lane.b32.xlu0 %v1315, 104
        %v1323 = vpop.permute.xlu0 %1322
        %1324 = vrot.lane.b32.xlu0 %v1316, 104
        %v1325 = vpop.permute.xlu0 %1324
        %1326 = vrot.lane.b32.xlu0 %v1317, 104
        %v1327 = vpop.permute.xlu0 %1326
        %v1328 = vsel %vm476, %v1325, %v1327
        %v1329 = vsel %vm476, %v1323, %v1325
        %v1330 = vsel %vm476, %v1321, %v1323
        %v1331 = vsel %vm476, %v1319, %v1321
        %v1332 = vsel %vm476, %v1327, %v1319
        %v1333 = vmax.f32 %v1313, %v1331
        %v1334 = vmax.f32 %v1314, %v1330
        %v1335 = vmax.f32 %v1315, %v1329
        %v1336 = vmax.f32 %v1316, %v1328
        %v1337 = vmax.f32 %v1317, %v1332
        %v1338 = vld [vmem:[#allocation6] sm:$0xff]
        %v1339 = vld [vmem:[#allocation6 + $0x8] sm:$0xff]
        %v1340 = vld [vmem:[#allocation6 + $0x10] sm:$0xff]
        %v1341 = vld [vmem:[#allocation6 + $0x18] sm:$0xff]
        %v1342 = vld [vmem:[#allocation6 + $0x20] sm:$0xff]
        %v1343 = vld [vmem:[#allocation6 + $0x28] sm:$0xff]
        %v1344 = vld [vmem:[#allocation6 + $0x30] sm:$0xff]
        %v1345 = vld [vmem:[#allocation6 + $0x38] sm:$0xff]
        %v1346 = vld [vmem:[#allocation6 + $0x40] sm:$0xff]
        %v1347 = vld [vmem:[#allocation6 + $0x48] sm:$0xff]
        %v1348 = vld [vmem:[#allocation6 + $0x50] sm:$0xff]
        %v1349 = vld [vmem:[#allocation6 + $0x58] sm:$0xff]
        %v1350 = vld [vmem:[#allocation6 + $0x60] sm:$0xff]
        %v1351 = vld [vmem:[#allocation6 + $0x68] sm:$0xff]
        %v1352 = vld [vmem:[#allocation6 + $0x70] sm:$0xff]
        %v1353 = vld [vmem:[#allocation6 + $0x78] sm:$0xff]
        %v1354 = vld [vmem:[#allocation6 + $0x80] sm:$0xff]
        %v1355 = vld [vmem:[#allocation6 + $0x88] sm:$0xff]
        %v1356 = vld [vmem:[#allocation6 + $0x90] sm:$0xff]
        %v1357 = vld [vmem:[#allocation6 + $0x98] sm:$0xff]
        %v1358 = vld [vmem:[#allocation6 + $0xa0] sm:$0xff]
        %v1359 = vld [vmem:[#allocation6 + $0xa8] sm:$0xff]
        %v1360 = vld [vmem:[#allocation6 + $0xb0] sm:$0xff]
        %v1361 = vld [vmem:[#allocation6 + $0xb8] sm:$0xff]
        %v1362 = vld [vmem:[#allocation6 + $0xc0] sm:$0xff]
        %v1363 = vld [vmem:[#allocation6 + $0xc8] sm:$0xff]
        %v1364 = vld [vmem:[#allocation6 + $0xd0] sm:$0xff]
        %v1365 = vld [vmem:[#allocation6 + $0xd8] sm:$0xff]
        %v1366 = vld [vmem:[#allocation6 + $0xe0] sm:$0xff]
        %v1367 = vld [vmem:[#allocation6 + $0xe8] sm:$0xff]
        %v1368 = vld [vmem:[#allocation6 + $0xf0] sm:$0xff]
        %v1369 = vld [vmem:[#allocation6 + $0xf8] sm:$0xff]
        %v1370 = vld [vmem:[#allocation6 + $0x100] sm:$0xff]
        %v1371 = vld [vmem:[#allocation6 + $0x108] sm:$0xff]
        %v1372 = vld [vmem:[#allocation6 + $0x110] sm:$0xff]
        %v1373 = vld [vmem:[#allocation6 + $0x118] sm:$0xff]
        %v1374 = vld [vmem:[#allocation6 + $0x120] sm:$0xff]
        %v1375 = vld [vmem:[#allocation6 + $0x128] sm:$0xff]
        %v1376 = vld [vmem:[#allocation6 + $0x130] sm:$0xff]
        %v1377 = vld [vmem:[#allocation6 + $0x138] sm:$0xff]
        %v1378 = vld [vmem:[#allocation6 + $0x140] sm:$0xff]
        %v1379 = vld [vmem:[#allocation6 + $0x148] sm:$0xff]
        %v1380 = vld [vmem:[#allocation6 + $0x150] sm:$0xff]
        %v1381 = vld [vmem:[#allocation6 + $0x158] sm:$0xff]
        %v1382 = vld [vmem:[#allocation6 + $0x160] sm:$0xff]
        %v1383 = vld [vmem:[#allocation6 + $0x168] sm:$0xff]
        %v1384 = vld [vmem:[#allocation6 + $0x170] sm:$0xff]
        %v1385 = vld [vmem:[#allocation6 + $0x178] sm:$0xff]
        %v1386 = vld [vmem:[#allocation6 + $0x180] sm:$0xff]
        %v1387 = vld [vmem:[#allocation6 + $0x188] sm:$0xff]
        %v1388 = vld [vmem:[#allocation6 + $0x190] sm:$0xff]
        %v1389 = vld [vmem:[#allocation6 + $0x198] sm:$0xff]
        %v1390 = vld [vmem:[#allocation6 + $0x1a0] sm:$0xff]
        %v1391 = vld [vmem:[#allocation6 + $0x1a8] sm:$0xff]
        %v1392 = vld [vmem:[#allocation6 + $0x1b0] sm:$0xff]
        %v1393 = vld [vmem:[#allocation6 + $0x1b8] sm:$0xff]
        %v1394 = vld [vmem:[#allocation6 + $0x1c0] sm:$0xff]
        %v1395 = vld [vmem:[#allocation6 + $0x1c8] sm:$0xff]
        %v1396 = vld [vmem:[#allocation6 + $0x1d0] sm:$0xff]
        %v1397 = vld [vmem:[#allocation6 + $0x1d8] sm:$0xff]
        %v1398 = vld [vmem:[#allocation6 + $0x1e0] sm:$0xff]
        %v1399 = vld [vmem:[#allocation6 + $0x1e8] sm:$0xff]
        %v1400 = vld [vmem:[#allocation6 + $0x1f0] sm:$0xff]
        %v1401 = vld [vmem:[#allocation6 + $0x1f8] sm:$0xff]
        %v1402 = vld [vmem:[#allocation6 + $0x200] sm:$0xff]
        %v1403 = vld [vmem:[#allocation6 + $0x208] sm:$0xff]
        %v1404 = vld [vmem:[#allocation6 + $0x210] sm:$0xff]
        %v1405 = vld [vmem:[#allocation6 + $0x218] sm:$0xff]
        %v1406 = vld [vmem:[#allocation6 + $0x220] sm:$0xff]
        %v1407 = vld [vmem:[#allocation6 + $0x228] sm:$0xff]
        %v1408 = vld [vmem:[#allocation6 + $0x230] sm:$0xff]
        %v1409 = vld [vmem:[#allocation6 + $0x238] sm:$0xff]
        %v1410 = vld [vmem:[#allocation6 + $0x240] sm:$0xff]
        %v1411 = vld [vmem:[#allocation6 + $0x248] sm:$0xff]
        %v1412 = vld [vmem:[#allocation6 + $0x250] sm:$0xff]
        %v1413 = vld [vmem:[#allocation6 + $0x258] sm:$0xff]
        %v1414 = vld [vmem:[#allocation6 + $0x260] sm:$0xff]
        %v1415 = vld [vmem:[#allocation6 + $0x268] sm:$0xff]
        %v1416 = vld [vmem:[#allocation6 + $0x270] sm:$0xff]
        %v1417 = vld [vmem:[#allocation6 + $0x278] sm:$0xff]
        %v1418 = vld [vmem:[%s5] sm:$0xff]
        %1420 = vset.pattern.permute.xlu0 0
        %1421 = vperm.xlu0 %1420, %v1418
        %v1422 = vpop.permute.xlu0 %1421
        %1424 = vmatprep.subr.mxu0 0.0
        %1425 = vmatpush1.msra.mxu0 %v1338
        %1426 = vmatprep.subr.mxu0 0.0
        %1427 = vmatpush1.msra.mxu0 %v1339
        %1428 = vmatprep.subr.mxu0 0.0
        %1429 = vmatpush1.msra.mxu0 %v1340
        %1430 = vmatprep.subr.mxu0 0.0
        %1431 = vmatpush1.msra.mxu0 %v1341
        %1432 = vmatprep.subr.mxu0 0.0
        %1433 = vmatpush1.msra.mxu0 %v1342
        %1434 = vmatprep.subr.mxu0 0.0
        %1435 = vmatpush1.msra.mxu0 %v1343
        %1436 = vmatprep.subr.mxu0 0.0
        %1437 = vmatpush1.msra.mxu0 %v1344
        %1438 = vmatprep.subr.mxu0 0.0
        %1439 = vmatpush1.msra.mxu0 %v1345
        %1440 = vmatprep.subr.mxu0 0.0
        %1441 = vmatpush1.msra.mxu0 %v1346
        %1442 = vmatprep.subr.mxu0 0.0
        %1443 = vmatpush1.msra.mxu0 %v1347
        %1444 = vmatprep.subr.mxu0 0.0
        %1445 = vmatpush1.msra.mxu0 %v1348
        %1446 = vmatprep.subr.mxu0 0.0
        %1447 = vmatpush1.msra.mxu0 %v1349
        %1448 = vmatprep.subr.mxu0 0.0
        %1449 = vmatpush1.msra.mxu0 %v1350
        %1450 = vmatprep.subr.mxu0 0.0
        %1451 = vmatpush1.msra.mxu0 %v1351
        %1452 = vmatprep.subr.mxu0 0.0
        %1453 = vmatpush1.msra.mxu0 %v1352
        %1454 = vmatprep.subr.mxu0 0.0
        %1455 = vmatpush1.msra.mxu0 %v1353
        %1456 = vmatprep.subr.mxu0 0.0
        %1457 = vmatpush1.msra.mxu0 %v1354
        %1458 = vmatprep.subr.mxu0 0.0
        %1459 = vmatpush1.msra.mxu0 %v1355
        %1460 = vmatprep.subr.mxu0 0.0
        %1461 = vmatpush1.msra.mxu0 %v1356
        %1462 = vmatprep.subr.mxu0 0.0
        %1463 = vmatpush1.msra.mxu0 %v1357
        %1464 = vmatprep.subr.mxu0 0.0
        %1465 = vmatpush1.msra.mxu0 %v1358
        %1466 = vmatprep.subr.mxu0 0.0
        %1467 = vmatpush1.msra.mxu0 %v1359
        %1468 = vmatprep.subr.mxu0 0.0
        %1469 = vmatpush1.msra.mxu0 %v1360
        %1470 = vmatprep.subr.mxu0 0.0
        %1471 = vmatpush1.msra.mxu0 %v1361
        %1472 = vmatprep.subr.mxu0 0.0
        %1473 = vmatpush1.msra.mxu0 %v1362
        %1474 = vmatprep.subr.mxu0 0.0
        %1475 = vmatpush1.msra.mxu0 %v1363
        %1476 = vmatprep.subr.mxu0 0.0
        %1477 = vmatpush1.msra.mxu0 %v1364
        %1478 = vmatprep.subr.mxu0 0.0
        %1479 = vmatpush1.msra.mxu0 %v1365
        %1480 = vmatprep.subr.mxu0 0.0
        %1481 = vmatpush1.msra.mxu0 %v1366
        %1482 = vmatprep.subr.mxu0 0.0
        %1483 = vmatpush1.msra.mxu0 %v1367
        %1484 = vmatprep.subr.mxu0 0.0
        %1485 = vmatpush1.msra.mxu0 %v1368
        %1486 = vmatprep.subr.mxu0 0.0
        %1487 = vmatpush1.msra.mxu0 %v1369
        %1488 = vmatprep.mubr.f32.mxu0 %v1334
        %1489 = vmatmul.mubr.f32.gmra.mrb[0].mxu0 %v1333
        %v1490 = vpop.f32.mrb[0].mxu0
        %v1491 = vadd.f32 %v1422, %v1490
        %v1492 = vpop.f32.mrb[0].mxu0
        %1493 = vdwg.mxu0
        %1494 = vmatprep.subr.mxu0 0.0
        %1495 = vmatpush1.msra.mxu0 %v1370
        %1496 = vmatprep.subr.mxu0 0.0
        %1497 = vmatpush1.msra.mxu0 %v1371
        %1498 = vmatprep.subr.mxu0 0.0
        %1499 = vmatpush1.msra.mxu0 %v1372
        %1500 = vmatprep.subr.mxu0 0.0
        %1501 = vmatpush1.msra.mxu0 %v1373
        %1502 = vmatprep.subr.mxu0 0.0
        %1503 = vmatpush1.msra.mxu0 %v1374
        %1504 = vmatprep.subr.mxu0 0.0
        %1505 = vmatpush1.msra.mxu0 %v1375
        %1506 = vmatprep.subr.mxu0 0.0
        %1507 = vmatpush1.msra.mxu0 %v1376
        %1508 = vmatprep.subr.mxu0 0.0
        %1509 = vmatpush1.msra.mxu0 %v1377
        %1510 = vmatprep.subr.mxu0 0.0
        %1511 = vmatpush1.msra.mxu0 %v1378
        %1512 = vmatprep.subr.mxu0 0.0
        %1513 = vmatpush1.msra.mxu0 %v1379
        %1514 = vmatprep.subr.mxu0 0.0
        %1515 = vmatpush1.msra.mxu0 %v1380
        %1516 = vmatprep.subr.mxu0 0.0
        %1517 = vmatpush1.msra.mxu0 %v1381
        %1518 = vmatprep.subr.mxu0 0.0
        %1519 = vmatpush1.msra.mxu0 %v1382
        %1520 = vmatprep.subr.mxu0 0.0
        %1521 = vmatpush1.msra.mxu0 %v1383
        %1522 = vmatprep.subr.mxu0 0.0
        %1523 = vmatpush1.msra.mxu0 %v1384
        %1524 = vmatprep.subr.mxu0 0.0
        %1525 = vmatpush1.msra.mxu0 %v1385
        %1526 = vmatprep.subr.mxu0 0.0
        %1527 = vmatpush1.msra.mxu0 %v1386
        %1528 = vmatprep.subr.mxu0 0.0
        %1529 = vmatpush1.msra.mxu0 %v1387
        %1530 = vmatprep.subr.mxu0 0.0
        %1531 = vmatpush1.msra.mxu0 %v1388
        %1532 = vmatprep.subr.mxu0 0.0
        %1533 = vmatpush1.msra.mxu0 %v1389
        %1534 = vmatprep.subr.mxu0 0.0
        %1535 = vmatpush1.msra.mxu0 %v1390
        %1536 = vmatprep.subr.mxu0 0.0
        %1537 = vmatpush1.msra.mxu0 %v1391
        %1538 = vmatprep.subr.mxu0 0.0
        %1539 = vmatpush1.msra.mxu0 %v1392
        %1540 = vmatprep.subr.mxu0 0.0
        %1541 = vmatpush1.msra.mxu0 %v1393
        %1542 = vmatprep.subr.mxu0 0.0
        %1543 = vmatpush1.msra.mxu0 %v1394
        %1544 = vmatprep.subr.mxu0 0.0
        %1545 = vmatpush1.msra.mxu0 %v1395
        %1546 = vmatprep.subr.mxu0 0.0
        %1547 = vmatpush1.msra.mxu0 %v1396
        %1548 = vmatprep.subr.mxu0 0.0
        %1549 = vmatpush1.msra.mxu0 %v1397
        %1550 = vmatprep.subr.mxu0 0.0
        %1551 = vmatpush1.msra.mxu0 %v1398
        %1552 = vmatprep.subr.mxu0 0.0
        %1553 = vmatpush1.msra.mxu0 %v1399
        %1554 = vmatprep.subr.mxu0 0.0
        %1555 = vmatpush1.msra.mxu0 %v1400
        %1556 = vmatprep.subr.mxu0 0.0
        %1557 = vmatpush1.msra.mxu0 %v1401
        %1558 = vmatprep.mubr.f32.mxu0 %v1336
        %1559 = vmatmul.mubr.f32.gmra.mrb[0].mxu0 %v1335
        %v1560 = vpop.f32.mrb[0].mxu0
        %v1561 = vadd.f32 %v1491, %v1560
        %v1562 = vpop.f32.mrb[0].mxu0
        %1563 = vdwg.mxu0
        %1564 = vmatprep.subr.mxu0 0.0
        %1565 = vmatpush1.msra.mxu0 %v1402
        %1566 = vmatprep.subr.mxu0 0.0
        %1567 = vmatpush1.msra.mxu0 %v1403
        %1568 = vmatprep.subr.mxu0 0.0
        %1569 = vmatpush1.msra.mxu0 %v1404
        %1570 = vmatprep.subr.mxu0 0.0
        %1571 = vmatpush1.msra.mxu0 %v1405
        %1572 = vmatprep.subr.mxu0 0.0
        %1573 = vmatpush1.msra.mxu0 %v1406
        %1574 = vmatprep.subr.mxu0 0.0
        %1575 = vmatpush1.msra.mxu0 %v1407
        %1576 = vmatprep.subr.mxu0 0.0
        %1577 = vmatpush1.msra.mxu0 %v1408
        %1578 = vmatprep.subr.mxu0 0.0
        %1579 = vmatpush1.msra.mxu0 %v1409
        %1580 = vmatprep.subr.mxu0 0.0
        %1581 = vmatpush1.msra.mxu0 %v1410
        %1582 = vmatprep.subr.mxu0 0.0
        %1583 = vmatpush1.msra.mxu0 %v1411
        %1584 = vmatprep.subr.mxu0 0.0
        %1585 = vmatpush1.msra.mxu0 %v1412
        %1586 = vmatprep.subr.mxu0 0.0
        %1587 = vmatpush1.msra.mxu0 %v1413
        %1588 = vmatprep.subr.mxu0 0.0
        %1589 = vmatpush1.msra.mxu0 %v1414
        %1590 = vmatprep.subr.mxu0 0.0
        %1591 = vmatpush1.msra.mxu0 %v1415
        %1592 = vmatprep.subr.mxu0 0.0
        %1593 = vmatpush1.msra.mxu0 %v1416
        %1594 = vmatprep.subr.mxu0 0.0
        %1595 = vmatpush1.msra.mxu0 %v1417
        %1596 = vmatprep.subr.mxu0 0.0
        %1597 = vmatpush1.msra.mxu0 0.0
        %1598 = vmatprep.subr.mxu0 0.0
        %1599 = vmatpush1.msra.mxu0 0.0
        %1600 = vmatprep.subr.mxu0 0.0
        %1601 = vmatpush1.msra.mxu0 0.0
        %1602 = vmatprep.subr.mxu0 0.0
        %1603 = vmatpush1.msra.mxu0 0.0
        %1604 = vmatprep.subr.mxu0 0.0
        %1605 = vmatpush1.msra.mxu0 0.0
        %1606 = vmatprep.subr.mxu0 0.0
        %1607 = vmatpush1.msra.mxu0 0.0
        %1608 = vmatprep.subr.mxu0 0.0
        %1609 = vmatpush1.msra.mxu0 0.0
        %1610 = vmatprep.subr.mxu0 0.0
        %1611 = vmatpush1.msra.mxu0 0.0
        %1612 = vmatprep.subr.mxu0 0.0
        %1613 = vmatpush1.msra.mxu0 0.0
        %1614 = vmatprep.subr.mxu0 0.0
        %1615 = vmatpush1.msra.mxu0 0.0
        %1616 = vmatprep.subr.mxu0 0.0
        %1617 = vmatpush1.msra.mxu0 0.0
        %1618 = vmatprep.subr.mxu0 0.0
        %1619 = vmatpush1.msra.mxu0 0.0
        %1620 = vmatprep.subr.mxu0 0.0
        %1621 = vmatpush1.msra.mxu0 0.0
        %1622 = vmatprep.subr.mxu0 0.0
        %1623 = vmatpush1.msra.mxu0 0.0
        %1624 = vmatprep.subr.mxu0 0.0
        %1625 = vmatpush1.msra.mxu0 0.0
        %1626 = vmatprep.subr.mxu0 0.0
        %1627 = vmatpush1.msra.mxu0 0.0
        %1628 = vmatprep.mubr.f32.mxu0 0.0
        %1629 = vmatmul.mubr.f32.gmra.mrb[0].mxu0 %v1337
        %v1630 = vpop.f32.mrb[0].mxu0
        %v1631 = vadd.f32 %v1561, %v1630
        %v1632 = vpop.f32.mrb[0].mxu0
        %1633 = vdwg.mxu0
        %1634 = vst [vmem:[%s309] sm:$0xff] %v1631
        %s1635 = sand.u32 %s185, 1
        %s1636 = scalar_lea.sflag [#allocation5], %s1635
        %s1637 = sand.u32 %s185, 1
        %s1638 = smul.addr %s1637, 8
        %s1639 = scalar_lea.vmem [#allocation8], %s1638
        // Predicated region
        $region57: #{tpu_custom_call.1} parent=47 // pred_check
          %p1640 = pneg %p195
        $region58: #{tpu_custom_call.1} parent=47 // pred_check_branch
          %1642 = sbr.rel (%p1640) target = $region60
        $region59: #{tpu_custom_call.1} parent=47 // pred_region
          %s1644 = ssub.s32 128, 128
          %1645 = vsyncadd %s1636, %s1644
          %s1646 = smul.addr %s25, 128
          %s1647 = scalar_lea.hbm %s7, %s1646
          %s1649 = sshll.u32 %s1639, 4
          %s1650 = int_to_ptr.vmem [resolvable:$true] %s1649
          %1652 = dma.vmem_to_hbm [thread:$0]  %s1650, 128, %s1647, %s1636
        $region60: #{tpu_custom_call.1} parent=47 // pred_fallthru
          _
      $region48: #{tpu_custom_call.1} parent=5 // pred_fallthru
        _
      %p1653 = scmp.le.s32.totalorder 2, %s20
      // Predicated region
      $region61: #{tpu_custom_call.1} parent=5 // pred_check
        %p1654 = pneg %p1653
      $region62: #{tpu_custom_call.1} parent=5 // pred_check_branch
        %1656 = sbr.rel (%p1654) target = $region64
      $region63: #{tpu_custom_call.1} parent=5 // pred_region
        %s1657 = ssub.s32 %s20, 2
        // Predicated region
        $region65: #{tpu_custom_call.1} parent=63 // pred_check
          %p1658 = pneg %p201
        $region66: #{tpu_custom_call.1} parent=63 // pred_check_branch
          %1660 = sbr.rel (%p1658) target = $region68
        $region67: #{tpu_custom_call.1} parent=63 // pred_region
          %s1661 = sand.u32 %s186, 1
          %s1662 = scalar_lea.sflag [#allocation5], %s1661
          %s1663 = sand.u32 %s186, 1
          %s1664 = smul.addr %s1663, 8
          %s1665 = scalar_lea.vmem [#allocation8], %s1664
          %1666 = dma.done %s1662, 128
        $region68: #{tpu_custom_call.1} parent=63 // pred_fallthru
          _
      $region64: #{tpu_custom_call.1} parent=5 // pred_fallthru
        _
    $region6: #{tpu_custom_call.1} parent=1 // loop_footer
      %s24 = sadd.s32 1, %s20
    $region7: #{tpu_custom_call.1} parent=1 // loop_footer_branch
      %19 = sbr.rel target = $region3
    $region8: #{tpu_custom_call.1} parent=1 // loop_exit
      _
    %1667 = vsyncpa [#allocation4], 1
    %s1668 = scalar_lea.sflag [#allocation4], 1
    %1669 = vsyncpa %s1668, 1
    %1670 = vsyncpa [#allocation7], 1
    %1671 = vsyncpa [#allocation5], 1
    %s1672 = scalar_lea.sflag [#allocation5], 1
    %1673 = vsyncpa %s1672, 1

</llo_original>
